<compile_context>
chip_gen: v7x
topology: tpu7x:2x2x1
jax: 0.10.0
libtpu: 0.0.40
codegen_flags: <defaults>
</compile_context>

<pallas_src>
import functools

import jax
import jax.numpy as jnp
from jax.experimental import pallas as pl
from jax.experimental.pallas import tpu as pltpu

EPS = 1e-5


def _round_up(x, m):
    return (x + m - 1) // m * m


def mlp_kernel(x_ref, win_ref, bin_ref, wres_ref, bres_ref, wout_ref, bout_ref,
               o_ref, *, num_res_blocks, logical_width, padded_width):
    inv_w = jnp.float32(1.0 / logical_width)
    need_mask = padded_width != logical_width
    if need_mask:
        lane = jax.lax.broadcasted_iota(jnp.int32, (1, padded_width), 1)
        mask = (lane < logical_width).astype(jnp.float32)

    # Invariant: padded lanes of the activation are always exactly zero, so plain
    # sums over the padded axis equal sums over the logical width.
    def center(z):
        m = jnp.sum(z, axis=-1, keepdims=True) * inv_w
        z = z - m
        if need_mask:
            z = z * mask  # re-zero pad lanes (centering made them -mean)
        return z

    def scale(z):
        ms = jnp.sum(z * z, axis=-1, keepdims=True) * inv_w
        return z * jax.lax.rsqrt(ms + EPS)  # pad lanes stay zero

    # Input linear: activations arrive as bf16 from HBM (half the DMA bytes of f32),
    # bf16 MXU operands, f32 accumulation.
    h = jnp.dot(x_ref[...], win_ref[...], preferred_element_type=jnp.float32)
    h = jnp.maximum(h + bin_ref[...], 0.0)
    # ext.Norm(affine=False): centering -> dropout(p=0, no-op) -> scaling
    h = scale(center(h))

    # ResBlockDropout x (depth - 1); small depth -> static unroll.
    # TODO(synk): on v6e/v7x the elementwise/residual chain could be kept in bf16
    # (bf16 VPU) with f32 sum / sum-of-squares only; kept all-f32 so v5e numerics
    # stay exact and vreg pressure is acceptable at tb<=256.
    for i in range(num_res_blocks):
        identity = h
        z = jnp.dot(h.astype(jnp.bfloat16), wres_ref[i],
                    preferred_element_type=jnp.float32)
        z = jnp.maximum(z + bres_ref[i], 0.0)   # fc1 + ReLU
        z = center(z)                           # LayerNormCentering
        z = z + identity                        # dropout(p=0) no-op, residual add
        h = scale(z)                            # LayerNormScaling

    # Output linear (lane-dense padded output store)
    out = jnp.dot(h.astype(jnp.bfloat16), wout_ref[...],
                  preferred_element_type=jnp.float32) + bout_ref[...]
    o_ref[...] = out.astype(o_ref.dtype)


def _vmem_budget_bytes():
    """~75% of the chip's physical VMEM (48 MiB on v7x, 96 MiB on v5e/v6e)."""
    try:
        phys = pltpu.get_tpu_info().vmem_capacity_bytes
    except Exception:
        phys = 64 * 1024 * 1024  # conservative fallback (v7x physical)
    return int(phys) * 3 // 4


def _estimate_vmem_bytes(tb, in_pad, w_pad, out_pad, num_res):
    """Resident-set estimate for one grid step (pipeline buffers + weights + temps)."""
    act = 2 * tb * in_pad * 2          # double-buffered bf16 activation tiles
    out = 2 * tb * out_pad * 4         # double-buffered f32 output tiles
    weights = (in_pad * w_pad * 2 + w_pad * 4
               + num_res * (w_pad * w_pad * 2 + w_pad * 4)
               + w_pad * out_pad * 2 + out_pad * 4)
    # TODO(synk): pipeline_mode=pl.Buffered(1) on the constant-index weight specs
    # would drop this 2x (they never change); left off until validated on the
    # deployed jax version.  Negligible at width=128.
    weights *= 2                       # compiler default double-buffering
    interm = 6 * tb * w_pad * 4        # live f32 (tb, w_pad) temps in the body
    return act + out + weights + interm + (1 << 20)  # 1 MiB slack


def res_cen_drop_scaling_mlp(x_nchw, params, *, depth, batch_tile=256):
    """x_nchw: (B, C, H, W) float32.  Returns (B, output_size) float32."""
    w_in, b_in, w_res, b_res, w_out, b_out = params
    input_size, width = w_in.shape
    output_size = w_out.shape[1]
    num_res = depth - 1
    assert w_res.shape == (num_res, width, width)

    B = x_nchw.shape[0]
    x = x_nchw.reshape(B, -1).astype(jnp.float32)  # ext.View(input_size)
    assert x.shape[1] == input_size

    # TPU-friendly padded sizes (zero padding is numerically exact; norm stats use
    # the logical width inside the kernel).
    in_pad = _round_up(input_size, 128)
    w_pad = _round_up(width, 128)
    out_pad = _round_up(output_size, 128)          # lane-dense output stores

    # Batch tile: multiple of 16 (bf16 (16,128) sublane packing); large default to
    # amortize per-grid-step overhead and feed the 256-wide MXUs on v6e/v7x.
    tb = _round_up(min(batch_tile, max(B, 1)), 16)
    b_pad = _round_up(B, tb)
    # v7x megacore: ensure the "parallel" batch axis has >=2 grid steps whenever the
    # batch is big enough, so both TensorCores get work.
    if b_pad // tb < 2 and B > 16:
        tb = _round_up(-(-B // 2), 16)
        b_pad = _round_up(B, tb)

    vmem_limit = _vmem_budget_bytes()
    # Shrink tb until the resident set fits the per-chip VMEM budget.
    # TODO(synk): for very large flattened inputs (e.g. 3x224x224 on v7x) add an
    # "arbitrary" K grid axis over input_size chunks for the first matmul with a
    # VMEM accumulator + pl.when init/finalize instead of shrinking tb.
    while tb > 16 and _estimate_vmem_bytes(tb, in_pad, w_pad, out_pad,
                                           num_res) > vmem_limit:
        tb = _round_up(tb // 2, 16)
        b_pad = _round_up(B, tb)
    need = _estimate_vmem_bytes(tb, in_pad, w_pad, out_pad, num_res)
    assert need <= vmem_limit, (
        f"resident VMEM estimate {need} B exceeds per-chip budget {vmem_limit} B; "
        "input_size too large without K-tiling of the first matmul")

    def pad2(a, r, c):
        return jnp.pad(a, ((0, r - a.shape[0]), (0, c - a.shape[1])))

    # Activations: zero-pad then cast to bf16 in HBM -> halves the dominant DMA stream.
    xp = pad2(x, b_pad, in_pad).astype(jnp.bfloat16)
    # Weights: zero-pad and cast to bf16 (MXU-native; halves weight DMA / VMEM bytes).
    win = pad2(w_in, in_pad, w_pad).astype(jnp.bfloat16)
    bin_ = pad2(b_in, 1, w_pad).astype(jnp.float32)
    wres = jnp.pad(w_res, ((0, 0), (0, w_pad - width),
                           (0, w_pad - width))).astype(jnp.bfloat16)
    bres = jnp.pad(b_res, ((0, 0), (0, 0), (0, w_pad - width))).astype(jnp.float32)
    wout = pad2(w_out, w_pad, out_pad).astype(jnp.bfloat16)
    bout = pad2(b_out, 1, out_pad).astype(jnp.float32)

    kernel = functools.partial(mlp_kernel, num_res_blocks=num_res,
                               logical_width=width, padded_width=w_pad)

    grid = (b_pad // tb,)
    out = pl.pallas_call(
        kernel,
        out_shape=jax.ShapeDtypeStruct((b_pad, out_pad), jnp.float32),
        grid_spec=pltpu.PrefetchScalarGridSpec(
            num_scalar_prefetch=0,
            grid=grid,
            in_specs=[
                # activations: tiled along batch (bf16, lane-dense)
                pl.BlockSpec((tb, in_pad), lambda i: (i, 0)),
                # weights / biases: constant block index -> resident in VMEM
                pl.BlockSpec((in_pad, w_pad), lambda i: (0, 0)),
                pl.BlockSpec((1, w_pad), lambda i: (0, 0)),
                pl.BlockSpec((num_res, w_pad, w_pad), lambda i: (0, 0, 0)),
                pl.BlockSpec((num_res, 1, w_pad), lambda i: (0, 0, 0)),
                pl.BlockSpec((w_pad, out_pad), lambda i: (0, 0)),
                pl.BlockSpec((1, out_pad), lambda i: (0, 0)),
            ],
            out_specs=pl.BlockSpec((tb, out_pad), lambda i: (i, 0)),
        ),
        compiler_params=pltpu.CompilerParams(
            # independent batch tiles -> megacore-shardable on v7x
            dimension_semantics=("parallel",),
            vmem_limit_bytes=vmem_limit,
        ),
    )(xp, win, bin_, wres, bres, wout, bout)
    return out[:B, :output_size]


def init_params(key, *, input_size, width, output_size, depth):
    """Deterministic PyTorch-style (uniform +-1/sqrt(fan_in)) init."""
    num_res = depth - 1
    ks = jax.random.split(key, 6)

    def lin(k, fan_in, shape):
        bound = 1.0 / jnp.sqrt(fan_in)
        return jax.random.uniform(k, shape, jnp.float32, -bound, bound)

    w_in = lin(ks[0], input_size, (input_size, width))
    b_in = lin(ks[1], input_size, (1, width))
    w_res = lin(ks[2], width, (num_res, width, width))
    b_res = lin(ks[3], width, (num_res, 1, width))
    w_out = lin(ks[4], width, (width, output_size))
    b_out = lin(ks[5], width, (1, output_size))
    return (w_in, b_in, w_res, b_res, w_out, b_out)


def _center_ref(x):
    return x - jnp.mean(x, axis=-1, keepdims=True)


def _scale_ref(x):
    return x * jax.lax.rsqrt(jnp.mean(x * x, axis=-1, keepdims=True) + EPS)


def reference_forward(x_nchw, params, *, depth, bf16_matmul=False):
    """Pure-JAX reference. bf16_matmul=True mirrors the kernel's MXU dtype."""
    w_in, b_in, w_res, b_res, w_out, b_out = params

    def mm(a, w):
        if bf16_matmul:
            return jnp.dot(a.astype(jnp.bfloat16), w.astype(jnp.bfloat16),
                           preferred_element_type=jnp.float32)
        return jnp.dot(a, w, preferred_element_type=jnp.float32)

    x = x_nchw.reshape(x_nchw.shape[0], -1)
    h = jnp.maximum(mm(x, w_in) + b_in, 0.0)
    h = _scale_ref(_center_ref(h))
    for i in range(depth - 1):
        ident = h
        z = jnp.maximum(mm(h, w_res[i]) + b_res[i], 0.0)
        z = _center_ref(z)
        z = z + ident
        h = _scale_ref(z)
    return mm(h, w_out) + b_out


def _check(x, params, depth):
    out = jax.block_until_ready(res_cen_drop_scaling_mlp(x, params, depth=depth))
    assert out.shape == (x.shape[0], params[4].shape[1])
    assert not bool(jnp.any(jnp.isnan(out)))
    # Tight check against a reference with identical bf16-operand / f32-accum matmuls.
    ref_bf16 = reference_forward(x, params, depth=depth, bf16_matmul=True)
    assert jnp.allclose(out, ref_bf16, rtol=5e-3, atol=5e-3), "mismatch vs bf16 reference"
    # Loose functional check against the pure-f32 reference (bf16 operand rounding).
    ref_f32 = reference_forward(x, params, depth=depth, bf16_matmul=False)
    assert jnp.allclose(out, ref_f32, rtol=1e-1, atol=1e-1), "mismatch vs f32 reference"
    return out


if __name__ == "__main__":
    # Small shapes consistent with the module: NCHW input flattened to input_size.
    C, H, W_img = 4, 16, 16
    input_size = C * H * W_img            # 1024
    width = 64
    depth = 4
    output_size = 10

    key = jax.random.PRNGKey(0)
    kx1, kx2, kp = jax.random.split(key, 3)
    params = init_params(kp, input_size=input_size, width=width,
                         output_size=output_size, depth=depth)

    # Single-tile path (tiny batch).
    x_small = jax.random.normal(kx1, (2, C, H, W_img), dtype=jnp.float32)
    _check(x_small, params, depth)

    # Multi-step grid path (batch split across >=2 grid steps / TensorCores).
    x_med = jax.random.normal(kx2, (40, C, H, W_img), dtype=jnp.float32)
    _check(x_med, params, depth)

    print("KERNEL_OK")
</pallas_src>

<mosaic_0001>
module attributes {stable_mosaic.version = 11 : i64} {
  func.func @mlp_kernel(%arg0: i32, %arg1: memref<16x1024xbf16, #tpu.memory_space<vmem>>, %arg2: memref<1024x128xbf16, #tpu.memory_space<vmem>>, %arg3: memref<1x128xf32, #tpu.memory_space<vmem>>, %arg4: memref<3x128x128xbf16, #tpu.memory_space<vmem>>, %arg5: memref<3x1x128xf32, #tpu.memory_space<vmem>>, %arg6: memref<128x128xbf16, #tpu.memory_space<vmem>>, %arg7: memref<1x128xf32, #tpu.memory_space<vmem>>, %arg8: memref<16x128xf32, #tpu.memory_space<vmem>>) attributes {dimension_semantics = [#tpu.dimension_semantics<parallel>], iteration_bounds = array<i64: 1>, scalar_prefetch = 0 : i64, scratch_operands = 0 : i64, tpu.core_type = #tpu.core_type<tc>, window_params = [{transform_indices = @transform_0, window_bounds = array<i64: 16, 1024>}, {pipeline_mode = #tpu.pipeline_mode<synchronous>, transform_indices = @transform_1, window_bounds = array<i64: 1024, 128>}, {pipeline_mode = #tpu.pipeline_mode<synchronous>, transform_indices = @transform_2, window_bounds = array<i64: 1, 128>}, {pipeline_mode = #tpu.pipeline_mode<synchronous>, transform_indices = @transform_3, window_bounds = array<i64: 3, 128, 128>}, {pipeline_mode = #tpu.pipeline_mode<synchronous>, transform_indices = @transform_4, window_bounds = array<i64: 3, 1, 128>}, {pipeline_mode = #tpu.pipeline_mode<synchronous>, transform_indices = @transform_5, window_bounds = array<i64: 128, 128>}, {pipeline_mode = #tpu.pipeline_mode<synchronous>, transform_indices = @transform_6, window_bounds = array<i64: 1, 128>}, {transform_indices = @transform_7, window_bounds = array<i64: 16, 128>}]} {
    %0 = tpu.iota {dimensions = array<i32: 1>} : vector<1x128xi32>
    %c64_i32 = arith.constant 64 : i32
    %1 = vector.broadcast %c64_i32 : i32 to vector<1x128xi32>
    %2 = arith.cmpi slt, %0, %1 : vector<1x128xi32>
    %3 = arith.extui %2 : vector<1x128xi1> to vector<1x128xi32>
    %4 = arith.sitofp %3 : vector<1x128xi32> to vector<1x128xf32>
    %c0 = arith.constant 0 : index
    %c0_0 = arith.constant 0 : index
    %5 = vector.load %arg1[%c0, %c0_0] : memref<16x1024xbf16, #tpu.memory_space<vmem>>, vector<16x1024xbf16>
    %c0_1 = arith.constant 0 : index
    %c0_2 = arith.constant 0 : index
    %6 = vector.load %arg2[%c0_1, %c0_2] : memref<1024x128xbf16, #tpu.memory_space<vmem>>, vector<1024x128xbf16>
    %cst = arith.constant dense<0.000000e+00> : vector<16x128xf32>
    %7 = tpu.matmul %5, %6, %cst {dimension_numbers = #tpu.dot_dimension_numbers<[1], [0], [0], [1], [0, 0, 1, 1], [], []>} : vector<16x1024xbf16>, vector<1024x128xbf16>, vector<16x128xf32> -> vector<16x128xf32>
    %c0_3 = arith.constant 0 : index
    %c0_4 = arith.constant 0 : index
    %8 = vector.load %arg3[%c0_3, %c0_4] : memref<1x128xf32, #tpu.memory_space<vmem>>, vector<1x128xf32>
    %9 = vector.broadcast %8 : vector<1x128xf32> to vector<16x128xf32>
    %10 = arith.addf %7, %9 : vector<16x128xf32>
    %cst_5 = arith.constant 0.000000e+00 : f32
    %11 = vector.broadcast %cst_5 : f32 to vector<16x128xf32>
    %12 = arith.maximumf %10, %11 : vector<16x128xf32>
    %cst_6 = arith.constant dense<0.000000e+00> : vector<16xf32>
    %13 = vector.multi_reduction <add>, %12, %cst_6 [1] : vector<16x128xf32> to vector<16xf32>
    %14 = vector.shape_cast %13 : vector<16xf32> to vector<16x1xf32>
    %cst_7 = arith.constant 1.562500e-02 : f32
    %15 = vector.broadcast %cst_7 : f32 to vector<16x1xf32>
    %16 = arith.mulf %14, %15 : vector<16x1xf32>
    %17 = vector.broadcast %16 : vector<16x1xf32> to vector<16x128xf32>
    %18 = arith.subf %12, %17 : vector<16x128xf32>
    %19 = vector.broadcast %4 : vector<1x128xf32> to vector<16x128xf32>
    %20 = arith.mulf %18, %19 : vector<16x128xf32>
    %21 = arith.mulf %20, %20 : vector<16x128xf32>
    %cst_8 = arith.constant dense<0.000000e+00> : vector<16xf32>
    %22 = vector.multi_reduction <add>, %21, %cst_8 [1] : vector<16x128xf32> to vector<16xf32>
    %23 = vector.shape_cast %22 : vector<16xf32> to vector<16x1xf32>
    %cst_9 = arith.constant 1.562500e-02 : f32
    %24 = vector.broadcast %cst_9 : f32 to vector<16x1xf32>
    %25 = arith.mulf %23, %24 : vector<16x1xf32>
    %cst_10 = arith.constant 9.99999974E-6 : f32
    %26 = vector.broadcast %cst_10 : f32 to vector<16x1xf32>
    %27 = arith.addf %25, %26 : vector<16x1xf32>
    %28 = math.rsqrt %27 : vector<16x1xf32>
    %29 = vector.broadcast %28 : vector<16x1xf32> to vector<16x128xf32>
    %30 = arith.mulf %20, %29 : vector<16x128xf32>
    %31 = arith.truncf %30 : vector<16x128xf32> to vector<16x128xbf16>
    %c0_11 = arith.constant 0 : index
    %c0_12 = arith.constant 0 : index
    %c0_13 = arith.constant 0 : index
    %32 = vector.load %arg4[%c0_11, %c0_12, %c0_13] : memref<3x128x128xbf16, #tpu.memory_space<vmem>>, vector<1x128x128xbf16>
    %33 = vector.shape_cast %32 : vector<1x128x128xbf16> to vector<128x128xbf16>
    %cst_14 = arith.constant dense<0.000000e+00> : vector<16x128xf32>
    %34 = tpu.matmul %31, %33, %cst_14 {dimension_numbers = #tpu.dot_dimension_numbers<[1], [0], [0], [1], [0, 0, 1, 1], [], []>} : vector<16x128xbf16>, vector<128x128xbf16>, vector<16x128xf32> -> vector<16x128xf32>
    %c0_15 = arith.constant 0 : index
    %c0_16 = arith.constant 0 : index
    %c0_17 = arith.constant 0 : index
    %35 = vector.load %arg5[%c0_15, %c0_16, %c0_17] : memref<3x1x128xf32, #tpu.memory_space<vmem>>, vector<1x1x128xf32>
    %36 = vector.shape_cast %35 : vector<1x1x128xf32> to vector<1x128xf32>
    %37 = vector.broadcast %36 : vector<1x128xf32> to vector<16x128xf32>
    %38 = arith.addf %34, %37 : vector<16x128xf32>
    %cst_18 = arith.constant 0.000000e+00 : f32
    %39 = vector.broadcast %cst_18 : f32 to vector<16x128xf32>
    %40 = arith.maximumf %38, %39 : vector<16x128xf32>
    %cst_19 = arith.constant dense<0.000000e+00> : vector<16xf32>
    %41 = vector.multi_reduction <add>, %40, %cst_19 [1] : vector<16x128xf32> to vector<16xf32>
    %42 = vector.shape_cast %41 : vector<16xf32> to vector<16x1xf32>
    %cst_20 = arith.constant 1.562500e-02 : f32
    %43 = vector.broadcast %cst_20 : f32 to vector<16x1xf32>
    %44 = arith.mulf %42, %43 : vector<16x1xf32>
    %45 = vector.broadcast %44 : vector<16x1xf32> to vector<16x128xf32>
    %46 = arith.subf %40, %45 : vector<16x128xf32>
    %47 = vector.broadcast %4 : vector<1x128xf32> to vector<16x128xf32>
    %48 = arith.mulf %46, %47 : vector<16x128xf32>
    %49 = arith.addf %48, %30 : vector<16x128xf32>
    %50 = arith.mulf %49, %49 : vector<16x128xf32>
    %cst_21 = arith.constant dense<0.000000e+00> : vector<16xf32>
    %51 = vector.multi_reduction <add>, %50, %cst_21 [1] : vector<16x128xf32> to vector<16xf32>
    %52 = vector.shape_cast %51 : vector<16xf32> to vector<16x1xf32>
    %cst_22 = arith.constant 1.562500e-02 : f32
    %53 = vector.broadcast %cst_22 : f32 to vector<16x1xf32>
    %54 = arith.mulf %52, %53 : vector<16x1xf32>
    %cst_23 = arith.constant 9.99999974E-6 : f32
    %55 = vector.broadcast %cst_23 : f32 to vector<16x1xf32>
    %56 = arith.addf %54, %55 : vector<16x1xf32>
    %57 = math.rsqrt %56 : vector<16x1xf32>
    %58 = vector.broadcast %57 : vector<16x1xf32> to vector<16x128xf32>
    %59 = arith.mulf %49, %58 : vector<16x128xf32>
    %60 = arith.truncf %59 : vector<16x128xf32> to vector<16x128xbf16>
    %c1 = arith.constant 1 : index
    %c0_24 = arith.constant 0 : index
    %c0_25 = arith.constant 0 : index
    %61 = vector.load %arg4[%c1, %c0_24, %c0_25] : memref<3x128x128xbf16, #tpu.memory_space<vmem>>, vector<1x128x128xbf16>
    %62 = vector.shape_cast %61 : vector<1x128x128xbf16> to vector<128x128xbf16>
    %cst_26 = arith.constant dense<0.000000e+00> : vector<16x128xf32>
    %63 = tpu.matmul %60, %62, %cst_26 {dimension_numbers = #tpu.dot_dimension_numbers<[1], [0], [0], [1], [0, 0, 1, 1], [], []>} : vector<16x128xbf16>, vector<128x128xbf16>, vector<16x128xf32> -> vector<16x128xf32>
    %c1_27 = arith.constant 1 : index
    %c0_28 = arith.constant 0 : index
    %c0_29 = arith.constant 0 : index
    %64 = vector.load %arg5[%c1_27, %c0_28, %c0_29] : memref<3x1x128xf32, #tpu.memory_space<vmem>>, vector<1x1x128xf32>
    %65 = vector.shape_cast %64 : vector<1x1x128xf32> to vector<1x128xf32>
    %66 = vector.broadcast %65 : vector<1x128xf32> to vector<16x128xf32>
    %67 = arith.addf %63, %66 : vector<16x128xf32>
    %cst_30 = arith.constant 0.000000e+00 : f32
    %68 = vector.broadcast %cst_30 : f32 to vector<16x128xf32>
    %69 = arith.maximumf %67, %68 : vector<16x128xf32>
    %cst_31 = arith.constant dense<0.000000e+00> : vector<16xf32>
    %70 = vector.multi_reduction <add>, %69, %cst_31 [1] : vector<16x128xf32> to vector<16xf32>
    %71 = vector.shape_cast %70 : vector<16xf32> to vector<16x1xf32>
    %cst_32 = arith.constant 1.562500e-02 : f32
    %72 = vector.broadcast %cst_32 : f32 to vector<16x1xf32>
    %73 = arith.mulf %71, %72 : vector<16x1xf32>
    %74 = vector.broadcast %73 : vector<16x1xf32> to vector<16x128xf32>
    %75 = arith.subf %69, %74 : vector<16x128xf32>
    %76 = vector.broadcast %4 : vector<1x128xf32> to vector<16x128xf32>
    %77 = arith.mulf %75, %76 : vector<16x128xf32>
    %78 = arith.addf %77, %59 : vector<16x128xf32>
    %79 = arith.mulf %78, %78 : vector<16x128xf32>
    %cst_33 = arith.constant dense<0.000000e+00> : vector<16xf32>
    %80 = vector.multi_reduction <add>, %79, %cst_33 [1] : vector<16x128xf32> to vector<16xf32>
    %81 = vector.shape_cast %80 : vector<16xf32> to vector<16x1xf32>
    %cst_34 = arith.constant 1.562500e-02 : f32
    %82 = vector.broadcast %cst_34 : f32 to vector<16x1xf32>
    %83 = arith.mulf %81, %82 : vector<16x1xf32>
    %cst_35 = arith.constant 9.99999974E-6 : f32
    %84 = vector.broadcast %cst_35 : f32 to vector<16x1xf32>
    %85 = arith.addf %83, %84 : vector<16x1xf32>
    %86 = math.rsqrt %85 : vector<16x1xf32>
    %87 = vector.broadcast %86 : vector<16x1xf32> to vector<16x128xf32>
    %88 = arith.mulf %78, %87 : vector<16x128xf32>
    %89 = arith.truncf %88 : vector<16x128xf32> to vector<16x128xbf16>
    %c2 = arith.constant 2 : index
    %c0_36 = arith.constant 0 : index
    %c0_37 = arith.constant 0 : index
    %90 = vector.load %arg4[%c2, %c0_36, %c0_37] : memref<3x128x128xbf16, #tpu.memory_space<vmem>>, vector<1x128x128xbf16>
    %91 = vector.shape_cast %90 : vector<1x128x128xbf16> to vector<128x128xbf16>
    %cst_38 = arith.constant dense<0.000000e+00> : vector<16x128xf32>
    %92 = tpu.matmul %89, %91, %cst_38 {dimension_numbers = #tpu.dot_dimension_numbers<[1], [0], [0], [1], [0, 0, 1, 1], [], []>} : vector<16x128xbf16>, vector<128x128xbf16>, vector<16x128xf32> -> vector<16x128xf32>
    %c2_39 = arith.constant 2 : index
    %c0_40 = arith.constant 0 : index
    %c0_41 = arith.constant 0 : index
    %93 = vector.load %arg5[%c2_39, %c0_40, %c0_41] : memref<3x1x128xf32, #tpu.memory_space<vmem>>, vector<1x1x128xf32>
    %94 = vector.shape_cast %93 : vector<1x1x128xf32> to vector<1x128xf32>
    %95 = vector.broadcast %94 : vector<1x128xf32> to vector<16x128xf32>
    %96 = arith.addf %92, %95 : vector<16x128xf32>
    %cst_42 = arith.constant 0.000000e+00 : f32
    %97 = vector.broadcast %cst_42 : f32 to vector<16x128xf32>
    %98 = arith.maximumf %96, %97 : vector<16x128xf32>
    %cst_43 = arith.constant dense<0.000000e+00> : vector<16xf32>
    %99 = vector.multi_reduction <add>, %98, %cst_43 [1] : vector<16x128xf32> to vector<16xf32>
    %100 = vector.shape_cast %99 : vector<16xf32> to vector<16x1xf32>
    %cst_44 = arith.constant 1.562500e-02 : f32
    %101 = vector.broadcast %cst_44 : f32 to vector<16x1xf32>
    %102 = arith.mulf %100, %101 : vector<16x1xf32>
    %103 = vector.broadcast %102 : vector<16x1xf32> to vector<16x128xf32>
    %104 = arith.subf %98, %103 : vector<16x128xf32>
    %105 = vector.broadcast %4 : vector<1x128xf32> to vector<16x128xf32>
    %106 = arith.mulf %104, %105 : vector<16x128xf32>
    %107 = arith.addf %106, %88 : vector<16x128xf32>
    %108 = arith.mulf %107, %107 : vector<16x128xf32>
    %cst_45 = arith.constant dense<0.000000e+00> : vector<16xf32>
    %109 = vector.multi_reduction <add>, %108, %cst_45 [1] : vector<16x128xf32> to vector<16xf32>
    %110 = vector.shape_cast %109 : vector<16xf32> to vector<16x1xf32>
    %cst_46 = arith.constant 1.562500e-02 : f32
    %111 = vector.broadcast %cst_46 : f32 to vector<16x1xf32>
    %112 = arith.mulf %110, %111 : vector<16x1xf32>
    %cst_47 = arith.constant 9.99999974E-6 : f32
    %113 = vector.broadcast %cst_47 : f32 to vector<16x1xf32>
    %114 = arith.addf %112, %113 : vector<16x1xf32>
    %115 = math.rsqrt %114 : vector<16x1xf32>
    %116 = vector.broadcast %115 : vector<16x1xf32> to vector<16x128xf32>
    %117 = arith.mulf %107, %116 : vector<16x128xf32>
    %118 = arith.truncf %117 : vector<16x128xf32> to vector<16x128xbf16>
    %c0_48 = arith.constant 0 : index
    %c0_49 = arith.constant 0 : index
    %119 = vector.load %arg6[%c0_48, %c0_49] : memref<128x128xbf16, #tpu.memory_space<vmem>>, vector<128x128xbf16>
    %cst_50 = arith.constant dense<0.000000e+00> : vector<16x128xf32>
    %120 = tpu.matmul %118, %119, %cst_50 {dimension_numbers = #tpu.dot_dimension_numbers<[1], [0], [0], [1], [0, 0, 1, 1], [], []>} : vector<16x128xbf16>, vector<128x128xbf16>, vector<16x128xf32> -> vector<16x128xf32>
    %c0_51 = arith.constant 0 : index
    %c0_52 = arith.constant 0 : index
    %121 = vector.load %arg7[%c0_51, %c0_52] : memref<1x128xf32, #tpu.memory_space<vmem>>, vector<1x128xf32>
    %122 = vector.broadcast %121 : vector<1x128xf32> to vector<16x128xf32>
    %123 = arith.addf %120, %122 : vector<16x128xf32>
    %c0_53 = arith.constant 0 : index
    %c0_54 = arith.constant 0 : index
    %124 = vector.load %arg8[%c0_53, %c0_54] : memref<16x128xf32, #tpu.memory_space<vmem>>, vector<16x128xf32>
    tpu.vector_store %arg8[%c0_53, %c0_54], %123 {strides = array<i32>} : memref<16x128xf32, #tpu.memory_space<vmem>>, vector<16x128xf32>,
    return
  }
  func.func @transform_0(%arg0: i32) -> (i32, i32) {
    %c0_i32 = arith.constant 0 : i32
    %c0_i32_0 = arith.constant 0 : i32
    return %arg0, %c0_i32 : i32, i32
  }
  func.func @transform_1(%arg0: i32) -> (i32, i32) {
    %c0_i32 = arith.constant 0 : i32
    %c0_i32_0 = arith.constant 0 : i32
    %c0_i32_1 = arith.constant 0 : i32
    return %c0_i32, %c0_i32_0 : i32, i32
  }
  func.func @transform_2(%arg0: i32) -> (i32, i32) {
    %c0_i32 = arith.constant 0 : i32
    %c0_i32_0 = arith.constant 0 : i32
    %c0_i32_1 = arith.constant 0 : i32
    return %c0_i32, %c0_i32_0 : i32, i32
  }
  func.func @transform_3(%arg0: i32) -> (i32, i32, i32) {
    %c0_i32 = arith.constant 0 : i32
    %c0_i32_0 = arith.constant 0 : i32
    %c0_i32_1 = arith.constant 0 : i32
    %c0_i32_2 = arith.constant 0 : i32
    return %c0_i32, %c0_i32_0, %c0_i32_1 : i32, i32, i32
  }
  func.func @transform_4(%arg0: i32) -> (i32, i32, i32) {
    %c0_i32 = arith.constant 0 : i32
    %c0_i32_0 = arith.constant 0 : i32
    %c0_i32_1 = arith.constant 0 : i32
    %c0_i32_2 = arith.constant 0 : i32
    return %c0_i32, %c0_i32_0, %c0_i32_1 : i32, i32, i32
  }
  func.func @transform_5(%arg0: i32) -> (i32, i32) {
    %c0_i32 = arith.constant 0 : i32
    %c0_i32_0 = arith.constant 0 : i32
    %c0_i32_1 = arith.constant 0 : i32
    return %c0_i32, %c0_i32_0 : i32, i32
  }
  func.func @transform_6(%arg0: i32) -> (i32, i32) {
    %c0_i32 = arith.constant 0 : i32
    %c0_i32_0 = arith.constant 0 : i32
    %c0_i32_1 = arith.constant 0 : i32
    return %c0_i32, %c0_i32_0 : i32, i32
  }
  func.func @transform_7(%arg0: i32) -> (i32, i32) {
    %c0_i32 = arith.constant 0 : i32
    %c0_i32_0 = arith.constant 0 : i32
    return %arg0, %c0_i32 : i32, i32
  }
}

</mosaic_0001>

<llo_original>
// kernel: tpu_custom_call.1
$region0: #{tpu_custom_call.1}
  #allocation0 [shape = 'u32[]', space=smem, size = 0x4, offset = 0x4, fixed_abs, tag = 'smem constant byte address 0x4 - core index']
  #allocation1 [shape = 'u32[144,128]{1,0:T(1,128)}', space=vmem, size = 0x12000, scoped, tag = 'internal scratch']
  %s0 = inlined_call_operand.hbm [shape: bf16[16,1024], index: 0, kind: input, shape index: {}]
  %s1 = inlined_call_operand.hbm [shape: bf16[1024,128], index: 1, kind: input, shape index: {}]
  %s2 = inlined_call_operand.vmem [shape: f32[1,128], index: 2, kind: input, shape index: {}]
  %s3 = inlined_call_operand.hbm [shape: bf16[3,128,128], index: 3, kind: input, shape index: {}]
  %s4 = inlined_call_operand.vmem [shape: f32[3,1,128], index: 4, kind: input, shape index: {}]
  %s5 = inlined_call_operand.hbm [shape: bf16[128,128], index: 5, kind: input, shape index: {}]
  %s6 = inlined_call_operand.vmem [shape: f32[1,128], index: 6, kind: input, shape index: {}]
  %s7 = inlined_call_operand.hbm [shape: f32[16,128], index: 7, kind: output, shape index: {}]
  %s8 = sld [smem:[#allocation0]]
  $region54: #{tpu_custom_call.1} parent=0
    _
  %s10 = ssub.s32 1, %s8
  %s11 = scalar_select 0, %s10, %s8
  $region1: #{tpu_custom_call.1} parent=0
    #allocation2 [shape = 'u8[32768]{0}', space=vmem, size = 0x8000, scoped, tag = 'input window, operand 0, single buffered']
    #allocation3 [shape = 's32[1]{0}', space=sflag, size = 0x4, scoped, tag = 'scoped memory for tpu_custom_call.1']
    #allocation4 [shape = 's32[1]{0}', space=sflag, size = 0x4, scoped, tag = 'scoped memory for tpu_custom_call.1']
    #allocation5 [shape = 'u8[262144]{0}', space=vmem, size = 0x40000, scoped, tag = 'input window, operand 1, single buffered']
    #allocation6 [shape = 's32[1]{0}', space=sflag, size = 0x4, scoped, tag = 'scoped memory for tpu_custom_call.1']
    #allocation7 [shape = 'u8[98304]{0}', space=vmem, size = 0x18000, scoped, tag = 'input window, operand 3, single buffered']
    #allocation8 [shape = 'u8[32768]{0}', space=vmem, size = 0x8000, scoped, tag = 'input window, operand 5, single buffered']
    #allocation9 [shape = 's32[1]{0}', space=sflag, size = 0x4, scoped, tag = 'scoped memory for tpu_custom_call.1']
    #allocation10 [shape = 'u8[8192]{0}', space=vmem, size = 0x2000, scoped, tag = 'output window, operand 0, single buffered']
    %12 = vsyncpa [#allocation3], 0
    %13 = vsyncpa [#allocation6], 0
    %14 = vsyncpa [#allocation9], 0
    %15 = vsyncpa [#allocation4], 0
    // Predicated region
    $region2: #{tpu_custom_call.1} parent=1 // pred_check
      _
    $region3: #{tpu_custom_call.1} parent=1 // pred_check_branch
      %17 = sbr.rel (0) target = $region5
    $region4: #{tpu_custom_call.1} parent=1 // pred_region
      %s19 = ssub.s32 1024, 1024
      %20 = vsyncadd [#allocation3], %s19
      %s21 = sshll.u32 [#allocation2], 4
      %s22 = int_to_ptr.vmem [resolvable:$true] %s21
      %27 = dma.hbm_to_vmem [thread:$0]  %s0, 1024, %s22, [#allocation3], 512, 512, 32
    $region5: #{tpu_custom_call.1} parent=1 // pred_fallthru
      _
    // Predicated region
    $region6: #{tpu_custom_call.1} parent=1 // pred_check
      _
    $region7: #{tpu_custom_call.1} parent=1 // pred_check_branch
      %29 = sbr.rel (0) target = $region9
    $region8: #{tpu_custom_call.1} parent=1 // pred_region
      %s31 = ssub.s32 8192, 8192
      %32 = vsyncadd [#allocation6], %s31
      %s33 = sshll.u32 [#allocation5], 4
      %s34 = int_to_ptr.vmem [resolvable:$true] %s33
      %39 = dma.hbm_to_vmem [thread:$0]  %s1, 8192, %s34, [#allocation6], 64, 64, 4
    $region9: #{tpu_custom_call.1} parent=1 // pred_fallthru
      _
    // Predicated region
    $region10: #{tpu_custom_call.1} parent=1 // pred_check
      _
    $region11: #{tpu_custom_call.1} parent=1 // pred_check_branch
      %41 = sbr.rel (0) target = $region13
    $region12: #{tpu_custom_call.1} parent=1 // pred_region
      _
    $region13: #{tpu_custom_call.1} parent=1 // pred_fallthru
      _
    // Predicated region
    $region14: #{tpu_custom_call.1} parent=1 // pred_check
      _
    $region15: #{tpu_custom_call.1} parent=1 // pred_check_branch
      %43 = sbr.rel (0) target = $region17
    $region16: #{tpu_custom_call.1} parent=1 // pred_region
      %s45 = ssub.s32 3072, 3072
      %46 = vsyncadd [#allocation6], %s45
      %s47 = sshll.u32 [#allocation7], 4
      %s48 = int_to_ptr.vmem [resolvable:$true] %s47
      %53 = dma.hbm_to_vmem [thread:$0]  %s3, 3072, %s48, [#allocation6], 64, 64, 4
    $region17: #{tpu_custom_call.1} parent=1 // pred_fallthru
      _
    // Predicated region
    $region18: #{tpu_custom_call.1} parent=1 // pred_check
      _
    $region19: #{tpu_custom_call.1} parent=1 // pred_check_branch
      %55 = sbr.rel (0) target = $region21
    $region20: #{tpu_custom_call.1} parent=1 // pred_region
      _
    $region21: #{tpu_custom_call.1} parent=1 // pred_fallthru
      _
    // Predicated region
    $region22: #{tpu_custom_call.1} parent=1 // pred_check
      _
    $region23: #{tpu_custom_call.1} parent=1 // pred_check_branch
      %57 = sbr.rel (0) target = $region25
    $region24: #{tpu_custom_call.1} parent=1 // pred_region
      %s59 = ssub.s32 1024, 1024
      %60 = vsyncadd [#allocation9], %s59
      %s61 = sshll.u32 [#allocation8], 4
      %s62 = int_to_ptr.vmem [resolvable:$true] %s61
      %67 = dma.hbm_to_vmem [thread:$0]  %s5, 1024, %s62, [#allocation9], 64, 64, 4
    $region25: #{tpu_custom_call.1} parent=1 // pred_fallthru
      _
    // Predicated region
    $region26: #{tpu_custom_call.1} parent=1 // pred_check
      _
    $region27: #{tpu_custom_call.1} parent=1 // pred_check_branch
      %69 = sbr.rel (0) target = $region29
    $region28: #{tpu_custom_call.1} parent=1 // pred_region
      _
    $region29: #{tpu_custom_call.1} parent=1 // pred_fallthru
      _
    // Predicated region
    $region30: #{tpu_custom_call.1} parent=1 // pred_check
      _
    $region31: #{tpu_custom_call.1} parent=1 // pred_check_branch
      %71 = sbr.rel (0) target = $region33
    $region32: #{tpu_custom_call.1} parent=1 // pred_region
      %72 = dma.done [#allocation3], 1024
    $region33: #{tpu_custom_call.1} parent=1 // pred_fallthru
      _
    // Predicated region
    $region34: #{tpu_custom_call.1} parent=1 // pred_check
      _
    $region35: #{tpu_custom_call.1} parent=1 // pred_check_branch
      %74 = sbr.rel (0) target = $region37
    $region36: #{tpu_custom_call.1} parent=1 // pred_region
      %75 = dma.done [#allocation6], 8192
    $region37: #{tpu_custom_call.1} parent=1 // pred_fallthru
      _
    // Predicated region
    $region38: #{tpu_custom_call.1} parent=1 // pred_check
      _
    $region39: #{tpu_custom_call.1} parent=1 // pred_check_branch
      %77 = sbr.rel (0) target = $region41
    $region40: #{tpu_custom_call.1} parent=1 // pred_region
      %78 = dma.done [#allocation6], 3072
    $region41: #{tpu_custom_call.1} parent=1 // pred_fallthru
      _
    // Predicated region
    $region42: #{tpu_custom_call.1} parent=1 // pred_check
      _
    $region43: #{tpu_custom_call.1} parent=1 // pred_check_branch
      %80 = sbr.rel (0) target = $region45
    $region44: #{tpu_custom_call.1} parent=1 // pred_region
      %81 = dma.done [#allocation9], 1024
    $region45: #{tpu_custom_call.1} parent=1 // pred_fallthru
      _
    %v83 = vlaneseq
    %v84 = vand.u32 %v83, 127
    %vm85 = vcmp.lt.s32.totalorder %v84, 64
    %v86 = vsel %vm85, 1, 0
    %v87 = vcvt.s32.f32 %v86
    %v88 = vld [vmem:[#allocation2] sm:$0xff]
    %v89 = vld [vmem:[#allocation2 + $0x8] sm:$0xff]
    %v90 = vld [vmem:[#allocation2 + $0x10] sm:$0xff]
    %v91 = vld [vmem:[#allocation2 + $0x18] sm:$0xff]
    %v92 = vld [vmem:[#allocation2 + $0x20] sm:$0xff]
    %v93 = vld [vmem:[#allocation2 + $0x28] sm:$0xff]
    %v94 = vld [vmem:[#allocation2 + $0x30] sm:$0xff]
    %v95 = vld [vmem:[#allocation2 + $0x38] sm:$0xff]
    %v96 = vld [vmem:[#allocation5] sm:$0xf]
    %v97 = vld [vmem:[#allocation5 + $0x4] sm:$0xf]
    %v98 = vld [vmem:[#allocation5 + $0x8] sm:$0xf]
    %v99 = vld [vmem:[#allocation5 + $0xc] sm:$0xf]
    %v100 = vld [vmem:[#allocation5 + $0x10] sm:$0xf]
    %v101 = vld [vmem:[#allocation5 + $0x14] sm:$0xf]
    %v102 = vld [vmem:[#allocation5 + $0x18] sm:$0xf]
    %v103 = vld [vmem:[#allocation5 + $0x1c] sm:$0xf]
    %v104 = vld [vmem:[#allocation5 + $0x20] sm:$0xf]
    %v105 = vld [vmem:[#allocation5 + $0x24] sm:$0xf]
    %v106 = vld [vmem:[#allocation5 + $0x28] sm:$0xf]
    %v107 = vld [vmem:[#allocation5 + $0x2c] sm:$0xf]
    %v108 = vld [vmem:[#allocation5 + $0x30] sm:$0xf]
    %v109 = vld [vmem:[#allocation5 + $0x34] sm:$0xf]
    %v110 = vld [vmem:[#allocation5 + $0x38] sm:$0xf]
    %v111 = vld [vmem:[#allocation5 + $0x3c] sm:$0xf]
    %v112 = vld [vmem:[#allocation5 + $0x40] sm:$0xf]
    %v113 = vld [vmem:[#allocation5 + $0x44] sm:$0xf]
    %v114 = vld [vmem:[#allocation5 + $0x48] sm:$0xf]
    %v115 = vld [vmem:[#allocation5 + $0x4c] sm:$0xf]
    %v116 = vld [vmem:[#allocation5 + $0x50] sm:$0xf]
    %v117 = vld [vmem:[#allocation5 + $0x54] sm:$0xf]
    %v118 = vld [vmem:[#allocation5 + $0x58] sm:$0xf]
    %v119 = vld [vmem:[#allocation5 + $0x5c] sm:$0xf]
    %v120 = vld [vmem:[#allocation5 + $0x60] sm:$0xf]
    %v121 = vld [vmem:[#allocation5 + $0x64] sm:$0xf]
    %v122 = vld [vmem:[#allocation5 + $0x68] sm:$0xf]
    %v123 = vld [vmem:[#allocation5 + $0x6c] sm:$0xf]
    %v124 = vld [vmem:[#allocation5 + $0x70] sm:$0xf]
    %v125 = vld [vmem:[#allocation5 + $0x74] sm:$0xf]
    %v126 = vld [vmem:[#allocation5 + $0x78] sm:$0xf]
    %v127 = vld [vmem:[#allocation5 + $0x7c] sm:$0xf]
    %v128 = vld [vmem:[#allocation5 + $0x80] sm:$0xf]
    %v129 = vld [vmem:[#allocation5 + $0x84] sm:$0xf]
    %v130 = vld [vmem:[#allocation5 + $0x88] sm:$0xf]
    %v131 = vld [vmem:[#allocation5 + $0x8c] sm:$0xf]
    %v132 = vld [vmem:[#allocation5 + $0x90] sm:$0xf]
    %v133 = vld [vmem:[#allocation5 + $0x94] sm:$0xf]
    %v134 = vld [vmem:[#allocation5 + $0x98] sm:$0xf]
    %v135 = vld [vmem:[#allocation5 + $0x9c] sm:$0xf]
    %v136 = vld [vmem:[#allocation5 + $0xa0] sm:$0xf]
    %v137 = vld [vmem:[#allocation5 + $0xa4] sm:$0xf]
    %v138 = vld [vmem:[#allocation5 + $0xa8] sm:$0xf]
    %v139 = vld [vmem:[#allocation5 + $0xac] sm:$0xf]
    %v140 = vld [vmem:[#allocation5 + $0xb0] sm:$0xf]
    %v141 = vld [vmem:[#allocation5 + $0xb4] sm:$0xf]
    %v142 = vld [vmem:[#allocation5 + $0xb8] sm:$0xf]
    %v143 = vld [vmem:[#allocation5 + $0xbc] sm:$0xf]
    %v144 = vld [vmem:[#allocation5 + $0xc0] sm:$0xf]
    %v145 = vld [vmem:[#allocation5 + $0xc4] sm:$0xf]
    %v146 = vld [vmem:[#allocation5 + $0xc8] sm:$0xf]
    %v147 = vld [vmem:[#allocation5 + $0xcc] sm:$0xf]
    %v148 = vld [vmem:[#allocation5 + $0xd0] sm:$0xf]
    %v149 = vld [vmem:[#allocation5 + $0xd4] sm:$0xf]
    %v150 = vld [vmem:[#allocation5 + $0xd8] sm:$0xf]
    %v151 = vld [vmem:[#allocation5 + $0xdc] sm:$0xf]
    %v152 = vld [vmem:[#allocation5 + $0xe0] sm:$0xf]
    %v153 = vld [vmem:[#allocation5 + $0xe4] sm:$0xf]
    %v154 = vld [vmem:[#allocation5 + $0xe8] sm:$0xf]
    %v155 = vld [vmem:[#allocation5 + $0xec] sm:$0xf]
    %v156 = vld [vmem:[#allocation5 + $0xf0] sm:$0xf]
    %v157 = vld [vmem:[#allocation5 + $0xf4] sm:$0xf]
    %v158 = vld [vmem:[#allocation5 + $0xf8] sm:$0xf]
    %v159 = vld [vmem:[#allocation5 + $0xfc] sm:$0xf]
    %v160 = vld [vmem:[#allocation5 + $0x100] sm:$0xf]
    %v161 = vld [vmem:[#allocation5 + $0x104] sm:$0xf]
    %v162 = vld [vmem:[#allocation5 + $0x108] sm:$0xf]
    %v163 = vld [vmem:[#allocation5 + $0x10c] sm:$0xf]
    %v164 = vld [vmem:[#allocation5 + $0x110] sm:$0xf]
    %v165 = vld [vmem:[#allocation5 + $0x114] sm:$0xf]
    %v166 = vld [vmem:[#allocation5 + $0x118] sm:$0xf]
    %v167 = vld [vmem:[#allocation5 + $0x11c] sm:$0xf]
    %v168 = vld [vmem:[#allocation5 + $0x120] sm:$0xf]
    %v169 = vld [vmem:[#allocation5 + $0x124] sm:$0xf]
    %v170 = vld [vmem:[#allocation5 + $0x128] sm:$0xf]
    %v171 = vld [vmem:[#allocation5 + $0x12c] sm:$0xf]
    %v172 = vld [vmem:[#allocation5 + $0x130] sm:$0xf]
    %v173 = vld [vmem:[#allocation5 + $0x134] sm:$0xf]
    %v174 = vld [vmem:[#allocation5 + $0x138] sm:$0xf]
    %v175 = vld [vmem:[#allocation5 + $0x13c] sm:$0xf]
    %v176 = vld [vmem:[#allocation5 + $0x140] sm:$0xf]
    %v177 = vld [vmem:[#allocation5 + $0x144] sm:$0xf]
    %v178 = vld [vmem:[#allocation5 + $0x148] sm:$0xf]
    %v179 = vld [vmem:[#allocation5 + $0x14c] sm:$0xf]
    %v180 = vld [vmem:[#allocation5 + $0x150] sm:$0xf]
    %v181 = vld [vmem:[#allocation5 + $0x154] sm:$0xf]
    %v182 = vld [vmem:[#allocation5 + $0x158] sm:$0xf]
    %v183 = vld [vmem:[#allocation5 + $0x15c] sm:$0xf]
    %v184 = vld [vmem:[#allocation5 + $0x160] sm:$0xf]
    %v185 = vld [vmem:[#allocation5 + $0x164] sm:$0xf]
    %v186 = vld [vmem:[#allocation5 + $0x168] sm:$0xf]
    %v187 = vld [vmem:[#allocation5 + $0x16c] sm:$0xf]
    %v188 = vld [vmem:[#allocation5 + $0x170] sm:$0xf]
    %v189 = vld [vmem:[#allocation5 + $0x174] sm:$0xf]
    %v190 = vld [vmem:[#allocation5 + $0x178] sm:$0xf]
    %v191 = vld [vmem:[#allocation5 + $0x17c] sm:$0xf]
    %v192 = vld [vmem:[#allocation5 + $0x180] sm:$0xf]
    %v193 = vld [vmem:[#allocation5 + $0x184] sm:$0xf]
    %v194 = vld [vmem:[#allocation5 + $0x188] sm:$0xf]
    %v195 = vld [vmem:[#allocation5 + $0x18c] sm:$0xf]
    %v196 = vld [vmem:[#allocation5 + $0x190] sm:$0xf]
    %v197 = vld [vmem:[#allocation5 + $0x194] sm:$0xf]
    %v198 = vld [vmem:[#allocation5 + $0x198] sm:$0xf]
    %v199 = vld [vmem:[#allocation5 + $0x19c] sm:$0xf]
    %v200 = vld [vmem:[#allocation5 + $0x1a0] sm:$0xf]
    %v201 = vld [vmem:[#allocation5 + $0x1a4] sm:$0xf]
    %v202 = vld [vmem:[#allocation5 + $0x1a8] sm:$0xf]
    %v203 = vld [vmem:[#allocation5 + $0x1ac] sm:$0xf]
    %v204 = vld [vmem:[#allocation5 + $0x1b0] sm:$0xf]
    %v205 = vld [vmem:[#allocation5 + $0x1b4] sm:$0xf]
    %v206 = vld [vmem:[#allocation5 + $0x1b8] sm:$0xf]
    %v207 = vld [vmem:[#allocation5 + $0x1bc] sm:$0xf]
    %v208 = vld [vmem:[#allocation5 + $0x1c0] sm:$0xf]
    %v209 = vld [vmem:[#allocation5 + $0x1c4] sm:$0xf]
    %v210 = vld [vmem:[#allocation5 + $0x1c8] sm:$0xf]
    %v211 = vld [vmem:[#allocation5 + $0x1cc] sm:$0xf]
    %v212 = vld [vmem:[#allocation5 + $0x1d0] sm:$0xf]
    %v213 = vld [vmem:[#allocation5 + $0x1d4] sm:$0xf]
    %v214 = vld [vmem:[#allocation5 + $0x1d8] sm:$0xf]
    %v215 = vld [vmem:[#allocation5 + $0x1dc] sm:$0xf]
    %v216 = vld [vmem:[#allocation5 + $0x1e0] sm:$0xf]
    %v217 = vld [vmem:[#allocation5 + $0x1e4] sm:$0xf]
    %v218 = vld [vmem:[#allocation5 + $0x1e8] sm:$0xf]
    %v219 = vld [vmem:[#allocation5 + $0x1ec] sm:$0xf]
    %v220 = vld [vmem:[#allocation5 + $0x1f0] sm:$0xf]
    %v221 = vld [vmem:[#allocation5 + $0x1f4] sm:$0xf]
    %v222 = vld [vmem:[#allocation5 + $0x1f8] sm:$0xf]
    %v223 = vld [vmem:[#allocation5 + $0x1fc] sm:$0xf]
    %v224 = vld [vmem:[%s2] sm:$0x1]
    %v226 = vlaneseq
    %v227 = vshrl.u32 %v226, 7
    %v228 = vsub.s32 0, %v227
    %v229 = vrot.slane %v224, %v228
    %v239 = vunpack.c.l.b16 %v88
    %v240 = vunpack.c.h.b16 %v88
    %v241 = vunpack.c.l.b16 %v89
    %v242 = vunpack.c.h.b16 %v89
    %v243 = vunpack.c.l.b16 %v90
    %v244 = vunpack.c.h.b16 %v90
    %v245 = vunpack.c.l.b16 %v91
    %v246 = vunpack.c.h.b16 %v91
    %v247 = vunpack.c.l.b16 %v92
    %v248 = vunpack.c.h.b16 %v92
    %v249 = vunpack.c.l.b16 %v93
    %v250 = vunpack.c.h.b16 %v93
    %v251 = vunpack.c.l.b16 %v94
    %v252 = vunpack.c.h.b16 %v94
    %v253 = vunpack.c.l.b16 %v95
    %v254 = vunpack.c.h.b16 %v95
    %v255 = vpack.c.b16 %v247, %v239
    %v256 = vpack.c.b16 %v248, %v240
    %v257 = vpack.c.b16 %v249, %v241
    %v258 = vpack.c.b16 %v250, %v242
    %v259 = vpack.c.b16 %v251, %v243
    %v260 = vpack.c.b16 %v252, %v244
    %v261 = vpack.c.b16 %v253, %v245
    %v262 = vpack.c.b16 %v254, %v246
    %v399 = vunpack.c.l.b16 %v96
    %v400 = vunpack.c.l.b16 %v97
    %v401 = vunpack.c.l.b16 %v98
    %v402 = vunpack.c.l.b16 %v99
    %v403 = vunpack.c.l.b16 %v100
    %v404 = vunpack.c.l.b16 %v101
    %v405 = vunpack.c.l.b16 %v102
    %v406 = vunpack.c.l.b16 %v103
    %v407 = vunpack.c.l.b16 %v104
    %v408 = vunpack.c.l.b16 %v105
    %v409 = vunpack.c.l.b16 %v106
    %v410 = vunpack.c.l.b16 %v107
    %v411 = vunpack.c.l.b16 %v108
    %v412 = vunpack.c.l.b16 %v109
    %v413 = vunpack.c.l.b16 %v110
    %v414 = vunpack.c.l.b16 %v111
    %v415 = vunpack.c.l.b16 %v112
    %v416 = vunpack.c.l.b16 %v113
    %v417 = vunpack.c.l.b16 %v114
    %v418 = vunpack.c.l.b16 %v115
    %v419 = vunpack.c.l.b16 %v116
    %v420 = vunpack.c.l.b16 %v117
    %v421 = vunpack.c.l.b16 %v118
    %v422 = vunpack.c.l.b16 %v119
    %v423 = vunpack.c.l.b16 %v120
    %v424 = vunpack.c.l.b16 %v121
    %v425 = vunpack.c.l.b16 %v122
    %v426 = vunpack.c.l.b16 %v123
    %v427 = vunpack.c.l.b16 %v124
    %v428 = vunpack.c.l.b16 %v125
    %v429 = vunpack.c.l.b16 %v126
    %v430 = vunpack.c.l.b16 %v127
    %v431 = vunpack.c.l.b16 %v128
    %v432 = vunpack.c.l.b16 %v129
    %v433 = vunpack.c.l.b16 %v130
    %v434 = vunpack.c.l.b16 %v131
    %v435 = vunpack.c.l.b16 %v132
    %v436 = vunpack.c.l.b16 %v133
    %v437 = vunpack.c.l.b16 %v134
    %v438 = vunpack.c.l.b16 %v135
    %v439 = vunpack.c.l.b16 %v136
    %v440 = vunpack.c.l.b16 %v137
    %v441 = vunpack.c.l.b16 %v138
    %v442 = vunpack.c.l.b16 %v139
    %v443 = vunpack.c.l.b16 %v140
    %v444 = vunpack.c.l.b16 %v141
    %v445 = vunpack.c.l.b16 %v142
    %v446 = vunpack.c.l.b16 %v143
    %v447 = vunpack.c.l.b16 %v144
    %v448 = vunpack.c.l.b16 %v145
    %v449 = vunpack.c.l.b16 %v146
    %v450 = vunpack.c.l.b16 %v147
    %v451 = vunpack.c.l.b16 %v148
    %v452 = vunpack.c.l.b16 %v149
    %v453 = vunpack.c.l.b16 %v150
    %v454 = vunpack.c.l.b16 %v151
    %v455 = vunpack.c.l.b16 %v152
    %v456 = vunpack.c.l.b16 %v153
    %v457 = vunpack.c.l.b16 %v154
    %v458 = vunpack.c.l.b16 %v155
    %v459 = vunpack.c.l.b16 %v156
    %v460 = vunpack.c.l.b16 %v157
    %v461 = vunpack.c.l.b16 %v158
    %v462 = vunpack.c.l.b16 %v159
    %v463 = vunpack.c.l.b16 %v160
    %v464 = vunpack.c.l.b16 %v161
    %v465 = vunpack.c.l.b16 %v162
    %v466 = vunpack.c.l.b16 %v163
    %v467 = vunpack.c.l.b16 %v164
    %v468 = vunpack.c.l.b16 %v165
    %v469 = vunpack.c.l.b16 %v166
    %v470 = vunpack.c.l.b16 %v167
    %v471 = vunpack.c.l.b16 %v168
    %v472 = vunpack.c.l.b16 %v169
    %v473 = vunpack.c.l.b16 %v170
    %v474 = vunpack.c.l.b16 %v171
    %v475 = vunpack.c.l.b16 %v172
    %v476 = vunpack.c.l.b16 %v173
    %v477 = vunpack.c.l.b16 %v174
    %v478 = vunpack.c.l.b16 %v175
    %v479 = vunpack.c.l.b16 %v176
    %v480 = vunpack.c.l.b16 %v177
    %v481 = vunpack.c.l.b16 %v178
    %v482 = vunpack.c.l.b16 %v179
    %v483 = vunpack.c.l.b16 %v180
    %v484 = vunpack.c.l.b16 %v181
    %v485 = vunpack.c.l.b16 %v182
    %v486 = vunpack.c.l.b16 %v183
    %v487 = vunpack.c.l.b16 %v184
    %v488 = vunpack.c.l.b16 %v185
    %v489 = vunpack.c.l.b16 %v186
    %v490 = vunpack.c.l.b16 %v187
    %v491 = vunpack.c.l.b16 %v188
    %v492 = vunpack.c.l.b16 %v189
    %v493 = vunpack.c.l.b16 %v190
    %v494 = vunpack.c.l.b16 %v191
    %v495 = vunpack.c.l.b16 %v192
    %v496 = vunpack.c.l.b16 %v193
    %v497 = vunpack.c.l.b16 %v194
    %v498 = vunpack.c.l.b16 %v195
    %v499 = vunpack.c.l.b16 %v196
    %v500 = vunpack.c.l.b16 %v197
    %v501 = vunpack.c.l.b16 %v198
    %v502 = vunpack.c.l.b16 %v199
    %v503 = vunpack.c.l.b16 %v200
    %v504 = vunpack.c.l.b16 %v201
    %v505 = vunpack.c.l.b16 %v202
    %v506 = vunpack.c.l.b16 %v203
    %v507 = vunpack.c.l.b16 %v204
    %v508 = vunpack.c.l.b16 %v205
    %v509 = vunpack.c.l.b16 %v206
    %v510 = vunpack.c.l.b16 %v207
    %v511 = vunpack.c.l.b16 %v208
    %v512 = vunpack.c.l.b16 %v209
    %v513 = vunpack.c.l.b16 %v210
    %v514 = vunpack.c.l.b16 %v211
    %v515 = vunpack.c.l.b16 %v212
    %v516 = vunpack.c.l.b16 %v213
    %v517 = vunpack.c.l.b16 %v214
    %v518 = vunpack.c.l.b16 %v215
    %v519 = vunpack.c.l.b16 %v216
    %v520 = vunpack.c.l.b16 %v217
    %v521 = vunpack.c.l.b16 %v218
    %v522 = vunpack.c.l.b16 %v219
    %v523 = vunpack.c.l.b16 %v220
    %v524 = vunpack.c.l.b16 %v221
    %v525 = vunpack.c.l.b16 %v222
    %v526 = vunpack.c.l.b16 %v223
    %v527 = vpack.c.b16 %v400, %v399
    %v528 = vpack.c.b16 %v402, %v401
    %v529 = vpack.c.b16 %v404, %v403
    %v530 = vpack.c.b16 %v406, %v405
    %v531 = vpack.c.b16 %v408, %v407
    %v532 = vpack.c.b16 %v410, %v409
    %v533 = vpack.c.b16 %v412, %v411
    %v534 = vpack.c.b16 %v414, %v413
    %v535 = vpack.c.b16 %v416, %v415
    %v536 = vpack.c.b16 %v418, %v417
    %v537 = vpack.c.b16 %v420, %v419
    %v538 = vpack.c.b16 %v422, %v421
    %v539 = vpack.c.b16 %v424, %v423
    %v540 = vpack.c.b16 %v426, %v425
    %v541 = vpack.c.b16 %v428, %v427
    %v542 = vpack.c.b16 %v430, %v429
    %v543 = vpack.c.b16 %v432, %v431
    %v544 = vpack.c.b16 %v434, %v433
    %v545 = vpack.c.b16 %v436, %v435
    %v546 = vpack.c.b16 %v438, %v437
    %v547 = vpack.c.b16 %v440, %v439
    %v548 = vpack.c.b16 %v442, %v441
    %v549 = vpack.c.b16 %v444, %v443
    %v550 = vpack.c.b16 %v446, %v445
    %v551 = vpack.c.b16 %v448, %v447
    %v552 = vpack.c.b16 %v450, %v449
    %v553 = vpack.c.b16 %v452, %v451
    %v554 = vpack.c.b16 %v454, %v453
    %v555 = vpack.c.b16 %v456, %v455
    %v556 = vpack.c.b16 %v458, %v457
    %v557 = vpack.c.b16 %v460, %v459
    %v558 = vpack.c.b16 %v462, %v461
    %v559 = vpack.c.b16 %v464, %v463
    %v560 = vpack.c.b16 %v466, %v465
    %v561 = vpack.c.b16 %v468, %v467
    %v562 = vpack.c.b16 %v470, %v469
    %v563 = vpack.c.b16 %v472, %v471
    %v564 = vpack.c.b16 %v474, %v473
    %v565 = vpack.c.b16 %v476, %v475
    %v566 = vpack.c.b16 %v478, %v477
    %v567 = vpack.c.b16 %v480, %v479
    %v568 = vpack.c.b16 %v482, %v481
    %v569 = vpack.c.b16 %v484, %v483
    %v570 = vpack.c.b16 %v486, %v485
    %v571 = vpack.c.b16 %v488, %v487
    %v572 = vpack.c.b16 %v490, %v489
    %v573 = vpack.c.b16 %v492, %v491
    %v574 = vpack.c.b16 %v494, %v493
    %v575 = vpack.c.b16 %v496, %v495
    %v576 = vpack.c.b16 %v498, %v497
    %v577 = vpack.c.b16 %v500, %v499
    %v578 = vpack.c.b16 %v502, %v501
    %v579 = vpack.c.b16 %v504, %v503
    %v580 = vpack.c.b16 %v506, %v505
    %v581 = vpack.c.b16 %v508, %v507
    %v582 = vpack.c.b16 %v510, %v509
    %v583 = vpack.c.b16 %v512, %v511
    %v584 = vpack.c.b16 %v514, %v513
    %v585 = vpack.c.b16 %v516, %v515
    %v586 = vpack.c.b16 %v518, %v517
    %v587 = vpack.c.b16 %v520, %v519
    %v588 = vpack.c.b16 %v522, %v521
    %v589 = vpack.c.b16 %v524, %v523
    %v590 = vpack.c.b16 %v526, %v525
    %655 = vmatprep.subr.bf16.mxu0 0
    %656 = vmatpush1.bf16.msra.mxu0 %v527
    %657 = vmatprep.subr.bf16.mxu0 0
    %658 = vmatpush1.bf16.msra.mxu0 %v528
    %659 = vmatprep.subr.bf16.mxu0 0
    %660 = vmatpush1.bf16.msra.mxu0 %v529
    %661 = vmatprep.subr.bf16.mxu0 0
    %662 = vmatpush1.bf16.msra.mxu0 %v530
    %663 = vmatprep.subr.bf16.mxu0 0
    %664 = vmatpush1.bf16.msra.mxu0 %v531
    %665 = vmatprep.subr.bf16.mxu0 0
    %666 = vmatpush1.bf16.msra.mxu0 %v532
    %667 = vmatprep.subr.bf16.mxu0 0
    %668 = vmatpush1.bf16.msra.mxu0 %v533
    %669 = vmatprep.subr.bf16.mxu0 0
    %670 = vmatpush1.bf16.msra.mxu0 %v534
    %671 = vmatprep.subr.bf16.mxu0 0
    %672 = vmatpush1.bf16.msra.mxu0 %v535
    %673 = vmatprep.subr.bf16.mxu0 0
    %674 = vmatpush1.bf16.msra.mxu0 %v536
    %675 = vmatprep.subr.bf16.mxu0 0
    %676 = vmatpush1.bf16.msra.mxu0 %v537
    %677 = vmatprep.subr.bf16.mxu0 0
    %678 = vmatpush1.bf16.msra.mxu0 %v538
    %679 = vmatprep.subr.bf16.mxu0 0
    %680 = vmatpush1.bf16.msra.mxu0 %v539
    %681 = vmatprep.subr.bf16.mxu0 0
    %682 = vmatpush1.bf16.msra.mxu0 %v540
    %683 = vmatprep.subr.bf16.mxu0 0
    %684 = vmatpush1.bf16.msra.mxu0 %v541
    %685 = vmatprep.subr.bf16.mxu0 0
    %686 = vmatpush1.bf16.msra.mxu0 %v542
    %687 = vmatprep.mubr.bf16.mxu0 %v256
    %688 = vmatmul.mubr.bf16.gmra.mrb[0].mxu0 %v255
    %v689 = vpop.f32.mrb[0].mxu0
    %v690 = vadd.f32 %v229, %v689
    %v691 = vpop.f32.mrb[0].mxu0
    %v692 = vpop.f32.mrb[0].mxu0
    %v693 = vadd.f32 %v229, %v692
    %v694 = vpop.f32.mrb[0].mxu0
    %695 = vdwg.mxu0
    %696 = vmatprep.subr.bf16.mxu0 0
    %697 = vmatpush1.bf16.msra.mxu0 %v543
    %698 = vmatprep.subr.bf16.mxu0 0
    %699 = vmatpush1.bf16.msra.mxu0 %v544
    %700 = vmatprep.subr.bf16.mxu0 0
    %701 = vmatpush1.bf16.msra.mxu0 %v545
    %702 = vmatprep.subr.bf16.mxu0 0
    %703 = vmatpush1.bf16.msra.mxu0 %v546
    %704 = vmatprep.subr.bf16.mxu0 0
    %705 = vmatpush1.bf16.msra.mxu0 %v547
    %706 = vmatprep.subr.bf16.mxu0 0
    %707 = vmatpush1.bf16.msra.mxu0 %v548
    %708 = vmatprep.subr.bf16.mxu0 0
    %709 = vmatpush1.bf16.msra.mxu0 %v549
    %710 = vmatprep.subr.bf16.mxu0 0
    %711 = vmatpush1.bf16.msra.mxu0 %v550
    %712 = vmatprep.subr.bf16.mxu0 0
    %713 = vmatpush1.bf16.msra.mxu0 %v551
    %714 = vmatprep.subr.bf16.mxu0 0
    %715 = vmatpush1.bf16.msra.mxu0 %v552
    %716 = vmatprep.subr.bf16.mxu0 0
    %717 = vmatpush1.bf16.msra.mxu0 %v553
    %718 = vmatprep.subr.bf16.mxu0 0
    %719 = vmatpush1.bf16.msra.mxu0 %v554
    %720 = vmatprep.subr.bf16.mxu0 0
    %721 = vmatpush1.bf16.msra.mxu0 %v555
    %722 = vmatprep.subr.bf16.mxu0 0
    %723 = vmatpush1.bf16.msra.mxu0 %v556
    %724 = vmatprep.subr.bf16.mxu0 0
    %725 = vmatpush1.bf16.msra.mxu0 %v557
    %726 = vmatprep.subr.bf16.mxu0 0
    %727 = vmatpush1.bf16.msra.mxu0 %v558
    %728 = vmatprep.mubr.bf16.mxu0 %v258
    %729 = vmatmul.mubr.bf16.gmra.mrb[0].mxu0 %v257
    %v730 = vpop.f32.mrb[0].mxu0
    %v731 = vadd.f32 %v690, %v730
    %v732 = vpop.f32.mrb[0].mxu0
    %v733 = vpop.f32.mrb[0].mxu0
    %v734 = vadd.f32 %v693, %v733
    %v735 = vpop.f32.mrb[0].mxu0
    %736 = vdwg.mxu0
    %737 = vmatprep.subr.bf16.mxu0 0
    %738 = vmatpush1.bf16.msra.mxu0 %v559
    %739 = vmatprep.subr.bf16.mxu0 0
    %740 = vmatpush1.bf16.msra.mxu0 %v560
    %741 = vmatprep.subr.bf16.mxu0 0
    %742 = vmatpush1.bf16.msra.mxu0 %v561
    %743 = vmatprep.subr.bf16.mxu0 0
    %744 = vmatpush1.bf16.msra.mxu0 %v562
    %745 = vmatprep.subr.bf16.mxu0 0
    %746 = vmatpush1.bf16.msra.mxu0 %v563
    %747 = vmatprep.subr.bf16.mxu0 0
    %748 = vmatpush1.bf16.msra.mxu0 %v564
    %749 = vmatprep.subr.bf16.mxu0 0
    %750 = vmatpush1.bf16.msra.mxu0 %v565
    %751 = vmatprep.subr.bf16.mxu0 0
    %752 = vmatpush1.bf16.msra.mxu0 %v566
    %753 = vmatprep.subr.bf16.mxu0 0
    %754 = vmatpush1.bf16.msra.mxu0 %v567
    %755 = vmatprep.subr.bf16.mxu0 0
    %756 = vmatpush1.bf16.msra.mxu0 %v568
    %757 = vmatprep.subr.bf16.mxu0 0
    %758 = vmatpush1.bf16.msra.mxu0 %v569
    %759 = vmatprep.subr.bf16.mxu0 0
    %760 = vmatpush1.bf16.msra.mxu0 %v570
    %761 = vmatprep.subr.bf16.mxu0 0
    %762 = vmatpush1.bf16.msra.mxu0 %v571
    %763 = vmatprep.subr.bf16.mxu0 0
    %764 = vmatpush1.bf16.msra.mxu0 %v572
    %765 = vmatprep.subr.bf16.mxu0 0
    %766 = vmatpush1.bf16.msra.mxu0 %v573
    %767 = vmatprep.subr.bf16.mxu0 0
    %768 = vmatpush1.bf16.msra.mxu0 %v574
    %769 = vmatprep.mubr.bf16.mxu0 %v260
    %770 = vmatmul.mubr.bf16.gmra.mrb[0].mxu0 %v259
    %v771 = vpop.f32.mrb[0].mxu0
    %v772 = vadd.f32 %v731, %v771
    %v773 = vpop.f32.mrb[0].mxu0
    %v774 = vpop.f32.mrb[0].mxu0
    %v775 = vadd.f32 %v734, %v774
    %v776 = vpop.f32.mrb[0].mxu0
    %777 = vdwg.mxu0
    %778 = vmatprep.subr.bf16.mxu0 0
    %779 = vmatpush1.bf16.msra.mxu0 %v575
    %780 = vmatprep.subr.bf16.mxu0 0
    %781 = vmatpush1.bf16.msra.mxu0 %v576
    %782 = vmatprep.subr.bf16.mxu0 0
    %783 = vmatpush1.bf16.msra.mxu0 %v577
    %784 = vmatprep.subr.bf16.mxu0 0
    %785 = vmatpush1.bf16.msra.mxu0 %v578
    %786 = vmatprep.subr.bf16.mxu0 0
    %787 = vmatpush1.bf16.msra.mxu0 %v579
    %788 = vmatprep.subr.bf16.mxu0 0
    %789 = vmatpush1.bf16.msra.mxu0 %v580
    %790 = vmatprep.subr.bf16.mxu0 0
    %791 = vmatpush1.bf16.msra.mxu0 %v581
    %792 = vmatprep.subr.bf16.mxu0 0
    %793 = vmatpush1.bf16.msra.mxu0 %v582
    %794 = vmatprep.subr.bf16.mxu0 0
    %795 = vmatpush1.bf16.msra.mxu0 %v583
    %796 = vmatprep.subr.bf16.mxu0 0
    %797 = vmatpush1.bf16.msra.mxu0 %v584
    %798 = vmatprep.subr.bf16.mxu0 0
    %799 = vmatpush1.bf16.msra.mxu0 %v585
    %800 = vmatprep.subr.bf16.mxu0 0
    %801 = vmatpush1.bf16.msra.mxu0 %v586
    %802 = vmatprep.subr.bf16.mxu0 0
    %803 = vmatpush1.bf16.msra.mxu0 %v587
    %804 = vmatprep.subr.bf16.mxu0 0
    %805 = vmatpush1.bf16.msra.mxu0 %v588
    %806 = vmatprep.subr.bf16.mxu0 0
    %807 = vmatpush1.bf16.msra.mxu0 %v589
    %808 = vmatprep.subr.bf16.mxu0 0
    %809 = vmatpush1.bf16.msra.mxu0 %v590
    %810 = vmatprep.mubr.bf16.mxu0 %v262
    %811 = vmatmul.mubr.bf16.gmra.mrb[0].mxu0 %v261
    %v812 = vpop.f32.mrb[0].mxu0
    %v813 = vadd.f32 %v772, %v812
    %v814 = vpop.f32.mrb[0].mxu0
    %v815 = vpop.f32.mrb[0].mxu0
    %v816 = vadd.f32 %v775, %v815
    %v817 = vpop.f32.mrb[0].mxu0
    %818 = vdwg.mxu0
    %v819 = vmax.f32 %v813, 0.0
    %v820 = vmax.f32 %v816, 0.0
    %821 = vadd.xlane.f32.xlu0 %v819
    %v822 = vpop.xlane.xlu0 %821
    %823 = vadd.xlane.f32.xlu0 %v820
    %v824 = vpop.xlane.xlu0 %823
    %v825 = vmul.f32 %v822, 0.015625
    %v826 = vmul.f32 %v824, 0.015625
    %v827 = vsub.f32 %v819, %v825
    %v828 = vsub.f32 %v820, %v826
    %v829 = vmul.f32 %v827, %v87
    %v830 = vmul.f32 %v828, %v87
    %v831 = vmul.f32 %v829, %v829
    %v832 = vmul.f32 %v830, %v830
    %833 = vadd.xlane.f32.xlu0 %v831
    %v834 = vpop.xlane.xlu0 %833
    %835 = vadd.xlane.f32.xlu0 %v832
    %v836 = vpop.xlane.xlu0 %835
    %v837 = vmul.f32 %v834, 0.015625
    %v838 = vmul.f32 %v836, 0.015625
    %v839 = vadd.f32 %v837, 1e-05
    %v840 = vadd.f32 %v838, 1e-05
    %v841 = vrsqrt.pop %v839
    %v842 = vrsqrt.pop %v840
    %v843 = vmul.f32 %v829, %v841
    %v844 = vmul.f32 %v830, %v842
    %v845 = vpack.c.bf16 %v844, %v843
    %v846 = vld [vmem:[#allocation7] sm:$0xf]
    %v847 = vld [vmem:[#allocation7 + $0x4] sm:$0xf]
    %v848 = vld [vmem:[#allocation7 + $0x8] sm:$0xf]
    %v849 = vld [vmem:[#allocation7 + $0xc] sm:$0xf]
    %v850 = vld [vmem:[#allocation7 + $0x10] sm:$0xf]
    %v851 = vld [vmem:[#allocation7 + $0x14] sm:$0xf]
    %v852 = vld [vmem:[#allocation7 + $0x18] sm:$0xf]
    %v853 = vld [vmem:[#allocation7 + $0x1c] sm:$0xf]
    %v854 = vld [vmem:[#allocation7 + $0x20] sm:$0xf]
    %v855 = vld [vmem:[#allocation7 + $0x24] sm:$0xf]
    %v856 = vld [vmem:[#allocation7 + $0x28] sm:$0xf]
    %v857 = vld [vmem:[#allocation7 + $0x2c] sm:$0xf]
    %v858 = vld [vmem:[#allocation7 + $0x30] sm:$0xf]
    %v859 = vld [vmem:[#allocation7 + $0x34] sm:$0xf]
    %v860 = vld [vmem:[#allocation7 + $0x38] sm:$0xf]
    %v861 = vld [vmem:[#allocation7 + $0x3c] sm:$0xf]
    %v862 = vld [vmem:[%s4] sm:$0x1]
    %v864 = vlaneseq
    %v865 = vshrl.u32 %v864, 7
    %v866 = vsub.s32 0, %v865
    %v867 = vrot.slane %v862, %v866
    %v885 = vunpack.c.l.b16 %v846
    %v886 = vunpack.c.l.b16 %v847
    %v887 = vunpack.c.l.b16 %v848
    %v888 = vunpack.c.l.b16 %v849
    %v889 = vunpack.c.l.b16 %v850
    %v890 = vunpack.c.l.b16 %v851
    %v891 = vunpack.c.l.b16 %v852
    %v892 = vunpack.c.l.b16 %v853
    %v893 = vunpack.c.l.b16 %v854
    %v894 = vunpack.c.l.b16 %v855
    %v895 = vunpack.c.l.b16 %v856
    %v896 = vunpack.c.l.b16 %v857
    %v897 = vunpack.c.l.b16 %v858
    %v898 = vunpack.c.l.b16 %v859
    %v899 = vunpack.c.l.b16 %v860
    %v900 = vunpack.c.l.b16 %v861
    %v901 = vpack.c.b16 %v886, %v885
    %v902 = vpack.c.b16 %v888, %v887
    %v903 = vpack.c.b16 %v890, %v889
    %v904 = vpack.c.b16 %v892, %v891
    %v905 = vpack.c.b16 %v894, %v893
    %v906 = vpack.c.b16 %v896, %v895
    %v907 = vpack.c.b16 %v898, %v897
    %v908 = vpack.c.b16 %v900, %v899
    %917 = vmatprep.subr.bf16.mxu0 0
    %918 = vmatpush1.bf16.msra.mxu0 %v901
    %919 = vmatprep.subr.bf16.mxu0 0
    %920 = vmatpush1.bf16.msra.mxu0 %v902
    %921 = vmatprep.subr.bf16.mxu0 0
    %922 = vmatpush1.bf16.msra.mxu0 %v903
    %923 = vmatprep.subr.bf16.mxu0 0
    %924 = vmatpush1.bf16.msra.mxu0 %v904
    %925 = vmatprep.subr.bf16.mxu0 0
    %926 = vmatpush1.bf16.msra.mxu0 %v905
    %927 = vmatprep.subr.bf16.mxu0 0
    %928 = vmatpush1.bf16.msra.mxu0 %v906
    %929 = vmatprep.subr.bf16.mxu0 0
    %930 = vmatpush1.bf16.msra.mxu0 %v907
    %931 = vmatprep.subr.bf16.mxu0 0
    %932 = vmatpush1.bf16.msra.mxu0 %v908
    %933 = vmatprep.subr.bf16.mxu0 0
    %934 = vmatpush1.bf16.msra.mxu0 0
    %935 = vmatprep.subr.bf16.mxu0 0
    %936 = vmatpush1.bf16.msra.mxu0 0
    %937 = vmatprep.subr.bf16.mxu0 0
    %938 = vmatpush1.bf16.msra.mxu0 0
    %939 = vmatprep.subr.bf16.mxu0 0
    %940 = vmatpush1.bf16.msra.mxu0 0
    %941 = vmatprep.subr.bf16.mxu0 0
    %942 = vmatpush1.bf16.msra.mxu0 0
    %943 = vmatprep.subr.bf16.mxu0 0
    %944 = vmatpush1.bf16.msra.mxu0 0
    %945 = vmatprep.subr.bf16.mxu0 0
    %946 = vmatpush1.bf16.msra.mxu0 0
    %947 = vmatprep.subr.bf16.mxu0 0
    %948 = vmatpush1.bf16.msra.mxu0 0
    %949 = vmatprep.mubr.bf16.mxu0 0
    %950 = vmatmul.mubr.bf16.gmra.mrb[0].mxu0 %v845
    %v951 = vpop.f32.mrb[0].mxu0
    %v952 = vadd.f32 %v867, %v951
    %v953 = vpop.f32.mrb[0].mxu0
    %v954 = vpop.f32.mrb[0].mxu0
    %v955 = vadd.f32 %v867, %v954
    %v956 = vpop.f32.mrb[0].mxu0
    %957 = vdwg.mxu0
    %v958 = vmax.f32 %v952, 0.0
    %v959 = vmax.f32 %v955, 0.0
    %960 = vadd.xlane.f32.xlu0 %v958
    %v961 = vpop.xlane.xlu0 %960
    %962 = vadd.xlane.f32.xlu0 %v959
    %v963 = vpop.xlane.xlu0 %962
    %v964 = vmul.f32 %v961, 0.015625
    %v965 = vmul.f32 %v963, 0.015625
    %v966 = vsub.f32 %v958, %v964
    %v967 = vsub.f32 %v959, %v965
    %v968 = vmul.f32 %v966, %v87
    %v969 = vmul.f32 %v967, %v87
    %v970 = vadd.f32 %v968, %v843
    %v971 = vadd.f32 %v969, %v844
    %v972 = vmul.f32 %v970, %v970
    %v973 = vmul.f32 %v971, %v971
    %974 = vadd.xlane.f32.xlu0 %v972
    %v975 = vpop.xlane.xlu0 %974
    %976 = vadd.xlane.f32.xlu0 %v973
    %v977 = vpop.xlane.xlu0 %976
    %v978 = vmul.f32 %v975, 0.015625
    %v979 = vmul.f32 %v977, 0.015625
    %v980 = vadd.f32 %v978, 1e-05
    %v981 = vadd.f32 %v979, 1e-05
    %v982 = vrsqrt.pop %v980
    %v983 = vrsqrt.pop %v981
    %v984 = vmul.f32 %v970, %v982
    %v985 = vmul.f32 %v971, %v983
    %v986 = vpack.c.bf16 %v985, %v984
    %s987 = scalar_lea.vmem [#allocation7], 64
    %v988 = vld [vmem:[%s987] sm:$0xf]
    %v989 = vld [vmem:[%s987 + $0x4] sm:$0xf]
    %v990 = vld [vmem:[%s987 + $0x8] sm:$0xf]
    %v991 = vld [vmem:[%s987 + $0xc] sm:$0xf]
    %v992 = vld [vmem:[%s987 + $0x10] sm:$0xf]
    %v993 = vld [vmem:[%s987 + $0x14] sm:$0xf]
    %v994 = vld [vmem:[%s987 + $0x18] sm:$0xf]
    %v995 = vld [vmem:[%s987 + $0x1c] sm:$0xf]
    %v996 = vld [vmem:[%s987 + $0x20] sm:$0xf]
    %v997 = vld [vmem:[%s987 + $0x24] sm:$0xf]
    %v998 = vld [vmem:[%s987 + $0x28] sm:$0xf]
    %v999 = vld [vmem:[%s987 + $0x2c] sm:$0xf]
    %v1000 = vld [vmem:[%s987 + $0x30] sm:$0xf]
    %v1001 = vld [vmem:[%s987 + $0x34] sm:$0xf]
    %v1002 = vld [vmem:[%s987 + $0x38] sm:$0xf]
    %v1003 = vld [vmem:[%s987 + $0x3c] sm:$0xf]
    %s1004 = scalar_lea.vmem %s4, 1
    %v1005 = vld [vmem:[%s1004] sm:$0x1]
    %v1007 = vlaneseq
    %v1008 = vshrl.u32 %v1007, 7
    %v1009 = vsub.s32 0, %v1008
    %v1010 = vrot.slane %v1005, %v1009
    %v1028 = vunpack.c.l.b16 %v988
    %v1029 = vunpack.c.l.b16 %v989
    %v1030 = vunpack.c.l.b16 %v990
    %v1031 = vunpack.c.l.b16 %v991
    %v1032 = vunpack.c.l.b16 %v992
    %v1033 = vunpack.c.l.b16 %v993
    %v1034 = vunpack.c.l.b16 %v994
    %v1035 = vunpack.c.l.b16 %v995
    %v1036 = vunpack.c.l.b16 %v996
    %v1037 = vunpack.c.l.b16 %v997
    %v1038 = vunpack.c.l.b16 %v998
    %v1039 = vunpack.c.l.b16 %v999
    %v1040 = vunpack.c.l.b16 %v1000
    %v1041 = vunpack.c.l.b16 %v1001
    %v1042 = vunpack.c.l.b16 %v1002
    %v1043 = vunpack.c.l.b16 %v1003
    %v1044 = vpack.c.b16 %v1029, %v1028
    %v1045 = vpack.c.b16 %v1031, %v1030
    %v1046 = vpack.c.b16 %v1033, %v1032
    %v1047 = vpack.c.b16 %v1035, %v1034
    %v1048 = vpack.c.b16 %v1037, %v1036
    %v1049 = vpack.c.b16 %v1039, %v1038
    %v1050 = vpack.c.b16 %v1041, %v1040
    %v1051 = vpack.c.b16 %v1043, %v1042
    %1060 = vmatprep.subr.bf16.mxu0 0
    %1061 = vmatpush1.bf16.msra.mxu0 %v1044
    %1062 = vmatprep.subr.bf16.mxu0 0
    %1063 = vmatpush1.bf16.msra.mxu0 %v1045
    %1064 = vmatprep.subr.bf16.mxu0 0
    %1065 = vmatpush1.bf16.msra.mxu0 %v1046
    %1066 = vmatprep.subr.bf16.mxu0 0
    %1067 = vmatpush1.bf16.msra.mxu0 %v1047
    %1068 = vmatprep.subr.bf16.mxu0 0
    %1069 = vmatpush1.bf16.msra.mxu0 %v1048
    %1070 = vmatprep.subr.bf16.mxu0 0
    %1071 = vmatpush1.bf16.msra.mxu0 %v1049
    %1072 = vmatprep.subr.bf16.mxu0 0
    %1073 = vmatpush1.bf16.msra.mxu0 %v1050
    %1074 = vmatprep.subr.bf16.mxu0 0
    %1075 = vmatpush1.bf16.msra.mxu0 %v1051
    %1076 = vmatprep.subr.bf16.mxu0 0
    %1077 = vmatpush1.bf16.msra.mxu0 0
    %1078 = vmatprep.subr.bf16.mxu0 0
    %1079 = vmatpush1.bf16.msra.mxu0 0
    %1080 = vmatprep.subr.bf16.mxu0 0
    %1081 = vmatpush1.bf16.msra.mxu0 0
    %1082 = vmatprep.subr.bf16.mxu0 0
    %1083 = vmatpush1.bf16.msra.mxu0 0
    %1084 = vmatprep.subr.bf16.mxu0 0
    %1085 = vmatpush1.bf16.msra.mxu0 0
    %1086 = vmatprep.subr.bf16.mxu0 0
    %1087 = vmatpush1.bf16.msra.mxu0 0
    %1088 = vmatprep.subr.bf16.mxu0 0
    %1089 = vmatpush1.bf16.msra.mxu0 0
    %1090 = vmatprep.subr.bf16.mxu0 0
    %1091 = vmatpush1.bf16.msra.mxu0 0
    %1092 = vmatprep.mubr.bf16.mxu0 0
    %1093 = vmatmul.mubr.bf16.gmra.mrb[0].mxu0 %v986
    %v1094 = vpop.f32.mrb[0].mxu0
    %v1095 = vadd.f32 %v1010, %v1094
    %v1096 = vpop.f32.mrb[0].mxu0
    %v1097 = vpop.f32.mrb[0].mxu0
    %v1098 = vadd.f32 %v1010, %v1097
    %v1099 = vpop.f32.mrb[0].mxu0
    %1100 = vdwg.mxu0
    %v1101 = vmax.f32 %v1095, 0.0
    %v1102 = vmax.f32 %v1098, 0.0
    %1103 = vadd.xlane.f32.xlu0 %v1101
    %v1104 = vpop.xlane.xlu0 %1103
    %1105 = vadd.xlane.f32.xlu0 %v1102
    %v1106 = vpop.xlane.xlu0 %1105
    %v1107 = vmul.f32 %v1104, 0.015625
    %v1108 = vmul.f32 %v1106, 0.015625
    %v1109 = vsub.f32 %v1101, %v1107
    %v1110 = vsub.f32 %v1102, %v1108
    %v1111 = vmul.f32 %v1109, %v87
    %v1112 = vmul.f32 %v1110, %v87
    %v1113 = vadd.f32 %v1111, %v984
    %v1114 = vadd.f32 %v1112, %v985
    %v1115 = vmul.f32 %v1113, %v1113
    %v1116 = vmul.f32 %v1114, %v1114
    %1117 = vadd.xlane.f32.xlu0 %v1115
    %v1118 = vpop.xlane.xlu0 %1117
    %1119 = vadd.xlane.f32.xlu0 %v1116
    %v1120 = vpop.xlane.xlu0 %1119
    %v1121 = vmul.f32 %v1118, 0.015625
    %v1122 = vmul.f32 %v1120, 0.015625
    %v1123 = vadd.f32 %v1121, 1e-05
    %v1124 = vadd.f32 %v1122, 1e-05
    %v1125 = vrsqrt.pop %v1123
    %v1126 = vrsqrt.pop %v1124
    %v1127 = vmul.f32 %v1113, %v1125
    %v1128 = vmul.f32 %v1114, %v1126
    %v1129 = vpack.c.bf16 %v1128, %v1127
    %s1130 = scalar_lea.vmem [#allocation7], 128
    %v1131 = vld [vmem:[%s1130] sm:$0xf]
    %v1132 = vld [vmem:[%s1130 + $0x4] sm:$0xf]
    %v1133 = vld [vmem:[%s1130 + $0x8] sm:$0xf]
    %v1134 = vld [vmem:[%s1130 + $0xc] sm:$0xf]
    %v1135 = vld [vmem:[%s1130 + $0x10] sm:$0xf]
    %v1136 = vld [vmem:[%s1130 + $0x14] sm:$0xf]
    %v1137 = vld [vmem:[%s1130 + $0x18] sm:$0xf]
    %v1138 = vld [vmem:[%s1130 + $0x1c] sm:$0xf]
    %v1139 = vld [vmem:[%s1130 + $0x20] sm:$0xf]
    %v1140 = vld [vmem:[%s1130 + $0x24] sm:$0xf]
    %v1141 = vld [vmem:[%s1130 + $0x28] sm:$0xf]
    %v1142 = vld [vmem:[%s1130 + $0x2c] sm:$0xf]
    %v1143 = vld [vmem:[%s1130 + $0x30] sm:$0xf]
    %v1144 = vld [vmem:[%s1130 + $0x34] sm:$0xf]
    %v1145 = vld [vmem:[%s1130 + $0x38] sm:$0xf]
    %v1146 = vld [vmem:[%s1130 + $0x3c] sm:$0xf]
    %s1147 = scalar_lea.vmem %s4, 2
    %v1148 = vld [vmem:[%s1147] sm:$0x1]
    %v1150 = vlaneseq
    %v1151 = vshrl.u32 %v1150, 7
    %v1152 = vsub.s32 0, %v1151
    %v1153 = vrot.slane %v1148, %v1152
    %v1171 = vunpack.c.l.b16 %v1131
    %v1172 = vunpack.c.l.b16 %v1132
    %v1173 = vunpack.c.l.b16 %v1133
    %v1174 = vunpack.c.l.b16 %v1134
    %v1175 = vunpack.c.l.b16 %v1135
    %v1176 = vunpack.c.l.b16 %v1136
    %v1177 = vunpack.c.l.b16 %v1137
    %v1178 = vunpack.c.l.b16 %v1138
    %v1179 = vunpack.c.l.b16 %v1139
    %v1180 = vunpack.c.l.b16 %v1140
    %v1181 = vunpack.c.l.b16 %v1141
    %v1182 = vunpack.c.l.b16 %v1142
    %v1183 = vunpack.c.l.b16 %v1143
    %v1184 = vunpack.c.l.b16 %v1144
    %v1185 = vunpack.c.l.b16 %v1145
    %v1186 = vunpack.c.l.b16 %v1146
    %v1187 = vpack.c.b16 %v1172, %v1171
    %v1188 = vpack.c.b16 %v1174, %v1173
    %v1189 = vpack.c.b16 %v1176, %v1175
    %v1190 = vpack.c.b16 %v1178, %v1177
    %v1191 = vpack.c.b16 %v1180, %v1179
    %v1192 = vpack.c.b16 %v1182, %v1181
    %v1193 = vpack.c.b16 %v1184, %v1183
    %v1194 = vpack.c.b16 %v1186, %v1185
    %1203 = vmatprep.subr.bf16.mxu0 0
    %1204 = vmatpush1.bf16.msra.mxu0 %v1187
    %1205 = vmatprep.subr.bf16.mxu0 0
    %1206 = vmatpush1.bf16.msra.mxu0 %v1188
    %1207 = vmatprep.subr.bf16.mxu0 0
    %1208 = vmatpush1.bf16.msra.mxu0 %v1189
    %1209 = vmatprep.subr.bf16.mxu0 0
    %1210 = vmatpush1.bf16.msra.mxu0 %v1190
    %1211 = vmatprep.subr.bf16.mxu0 0
    %1212 = vmatpush1.bf16.msra.mxu0 %v1191
    %1213 = vmatprep.subr.bf16.mxu0 0
    %1214 = vmatpush1.bf16.msra.mxu0 %v1192
    %1215 = vmatprep.subr.bf16.mxu0 0
    %1216 = vmatpush1.bf16.msra.mxu0 %v1193
    %1217 = vmatprep.subr.bf16.mxu0 0
    %1218 = vmatpush1.bf16.msra.mxu0 %v1194
    %1219 = vmatprep.subr.bf16.mxu0 0
    %1220 = vmatpush1.bf16.msra.mxu0 0
    %1221 = vmatprep.subr.bf16.mxu0 0
    %1222 = vmatpush1.bf16.msra.mxu0 0
    %1223 = vmatprep.subr.bf16.mxu0 0
    %1224 = vmatpush1.bf16.msra.mxu0 0
    %1225 = vmatprep.subr.bf16.mxu0 0
    %1226 = vmatpush1.bf16.msra.mxu0 0
    %1227 = vmatprep.subr.bf16.mxu0 0
    %1228 = vmatpush1.bf16.msra.mxu0 0
    %1229 = vmatprep.subr.bf16.mxu0 0
    %1230 = vmatpush1.bf16.msra.mxu0 0
    %1231 = vmatprep.subr.bf16.mxu0 0
    %1232 = vmatpush1.bf16.msra.mxu0 0
    %1233 = vmatprep.subr.bf16.mxu0 0
    %1234 = vmatpush1.bf16.msra.mxu0 0
    %1235 = vmatprep.mubr.bf16.mxu0 0
    %1236 = vmatmul.mubr.bf16.gmra.mrb[0].mxu0 %v1129
    %v1237 = vpop.f32.mrb[0].mxu0
    %v1238 = vadd.f32 %v1153, %v1237
    %v1239 = vpop.f32.mrb[0].mxu0
    %v1240 = vpop.f32.mrb[0].mxu0
    %v1241 = vadd.f32 %v1153, %v1240
    %v1242 = vpop.f32.mrb[0].mxu0
    %1243 = vdwg.mxu0
    %v1244 = vmax.f32 %v1238, 0.0
    %v1245 = vmax.f32 %v1241, 0.0
    %1246 = vadd.xlane.f32.xlu0 %v1244
    %v1247 = vpop.xlane.xlu0 %1246
    %1248 = vadd.xlane.f32.xlu0 %v1245
    %v1249 = vpop.xlane.xlu0 %1248
    %v1250 = vmul.f32 %v1247, 0.015625
    %v1251 = vmul.f32 %v1249, 0.015625
    %v1252 = vsub.f32 %v1244, %v1250
    %v1253 = vsub.f32 %v1245, %v1251
    %v1254 = vmul.f32 %v1252, %v87
    %v1255 = vmul.f32 %v1253, %v87
    %v1256 = vadd.f32 %v1254, %v1127
    %v1257 = vadd.f32 %v1255, %v1128
    %v1258 = vmul.f32 %v1256, %v1256
    %v1259 = vmul.f32 %v1257, %v1257
    %1260 = vadd.xlane.f32.xlu0 %v1258
    %v1261 = vpop.xlane.xlu0 %1260
    %1262 = vadd.xlane.f32.xlu0 %v1259
    %v1263 = vpop.xlane.xlu0 %1262
    %v1264 = vmul.f32 %v1261, 0.015625
    %v1265 = vmul.f32 %v1263, 0.015625
    %v1266 = vadd.f32 %v1264, 1e-05
    %v1267 = vadd.f32 %v1265, 1e-05
    %v1268 = vrsqrt.pop %v1266
    %v1269 = vrsqrt.pop %v1267
    %v1270 = vmul.f32 %v1256, %v1268
    %v1271 = vmul.f32 %v1257, %v1269
    %v1272 = vpack.c.bf16 %v1271, %v1270
    %v1273 = vld [vmem:[#allocation8] sm:$0xf]
    %v1274 = vld [vmem:[#allocation8 + $0x4] sm:$0xf]
    %v1275 = vld [vmem:[#allocation8 + $0x8] sm:$0xf]
    %v1276 = vld [vmem:[#allocation8 + $0xc] sm:$0xf]
    %v1277 = vld [vmem:[#allocation8 + $0x10] sm:$0xf]
    %v1278 = vld [vmem:[#allocation8 + $0x14] sm:$0xf]
    %v1279 = vld [vmem:[#allocation8 + $0x18] sm:$0xf]
    %v1280 = vld [vmem:[#allocation8 + $0x1c] sm:$0xf]
    %v1281 = vld [vmem:[#allocation8 + $0x20] sm:$0xf]
    %v1282 = vld [vmem:[#allocation8 + $0x24] sm:$0xf]
    %v1283 = vld [vmem:[#allocation8 + $0x28] sm:$0xf]
    %v1284 = vld [vmem:[#allocation8 + $0x2c] sm:$0xf]
    %v1285 = vld [vmem:[#allocation8 + $0x30] sm:$0xf]
    %v1286 = vld [vmem:[#allocation8 + $0x34] sm:$0xf]
    %v1287 = vld [vmem:[#allocation8 + $0x38] sm:$0xf]
    %v1288 = vld [vmem:[#allocation8 + $0x3c] sm:$0xf]
    %v1289 = vld [vmem:[%s6] sm:$0x1]
    %v1291 = vlaneseq
    %v1292 = vshrl.u32 %v1291, 7
    %v1293 = vsub.s32 0, %v1292
    %v1294 = vrot.slane %v1289, %v1293
    %v1312 = vunpack.c.l.b16 %v1273
    %v1313 = vunpack.c.l.b16 %v1274
    %v1314 = vunpack.c.l.b16 %v1275
    %v1315 = vunpack.c.l.b16 %v1276
    %v1316 = vunpack.c.l.b16 %v1277
    %v1317 = vunpack.c.l.b16 %v1278
    %v1318 = vunpack.c.l.b16 %v1279
    %v1319 = vunpack.c.l.b16 %v1280
    %v1320 = vunpack.c.l.b16 %v1281
    %v1321 = vunpack.c.l.b16 %v1282
    %v1322 = vunpack.c.l.b16 %v1283
    %v1323 = vunpack.c.l.b16 %v1284
    %v1324 = vunpack.c.l.b16 %v1285
    %v1325 = vunpack.c.l.b16 %v1286
    %v1326 = vunpack.c.l.b16 %v1287
    %v1327 = vunpack.c.l.b16 %v1288
    %v1328 = vpack.c.b16 %v1313, %v1312
    %v1329 = vpack.c.b16 %v1315, %v1314
    %v1330 = vpack.c.b16 %v1317, %v1316
    %v1331 = vpack.c.b16 %v1319, %v1318
    %v1332 = vpack.c.b16 %v1321, %v1320
    %v1333 = vpack.c.b16 %v1323, %v1322
    %v1334 = vpack.c.b16 %v1325, %v1324
    %v1335 = vpack.c.b16 %v1327, %v1326
    %1344 = vmatprep.subr.bf16.mxu0 0
    %1345 = vmatpush1.bf16.msra.mxu0 %v1328
    %1346 = vmatprep.subr.bf16.mxu0 0
    %1347 = vmatpush1.bf16.msra.mxu0 %v1329
    %1348 = vmatprep.subr.bf16.mxu0 0
    %1349 = vmatpush1.bf16.msra.mxu0 %v1330
    %1350 = vmatprep.subr.bf16.mxu0 0
    %1351 = vmatpush1.bf16.msra.mxu0 %v1331
    %1352 = vmatprep.subr.bf16.mxu0 0
    %1353 = vmatpush1.bf16.msra.mxu0 %v1332
    %1354 = vmatprep.subr.bf16.mxu0 0
    %1355 = vmatpush1.bf16.msra.mxu0 %v1333
    %1356 = vmatprep.subr.bf16.mxu0 0
    %1357 = vmatpush1.bf16.msra.mxu0 %v1334
    %1358 = vmatprep.subr.bf16.mxu0 0
    %1359 = vmatpush1.bf16.msra.mxu0 %v1335
    %1360 = vmatprep.subr.bf16.mxu0 0
    %1361 = vmatpush1.bf16.msra.mxu0 0
    %1362 = vmatprep.subr.bf16.mxu0 0
    %1363 = vmatpush1.bf16.msra.mxu0 0
    %1364 = vmatprep.subr.bf16.mxu0 0
    %1365 = vmatpush1.bf16.msra.mxu0 0
    %1366 = vmatprep.subr.bf16.mxu0 0
    %1367 = vmatpush1.bf16.msra.mxu0 0
    %1368 = vmatprep.subr.bf16.mxu0 0
    %1369 = vmatpush1.bf16.msra.mxu0 0
    %1370 = vmatprep.subr.bf16.mxu0 0
    %1371 = vmatpush1.bf16.msra.mxu0 0
    %1372 = vmatprep.subr.bf16.mxu0 0
    %1373 = vmatpush1.bf16.msra.mxu0 0
    %1374 = vmatprep.subr.bf16.mxu0 0
    %1375 = vmatpush1.bf16.msra.mxu0 0
    %1376 = vmatprep.mubr.bf16.mxu0 0
    %1377 = vmatmul.mubr.bf16.gmra.mrb[0].mxu0 %v1272
    %v1378 = vpop.f32.mrb[0].mxu0
    %v1379 = vadd.f32 %v1294, %v1378
    %v1380 = vpop.f32.mrb[0].mxu0
    %v1381 = vpop.f32.mrb[0].mxu0
    %v1382 = vadd.f32 %v1294, %v1381
    %v1383 = vpop.f32.mrb[0].mxu0
    %1384 = vdwg.mxu0
    %1385 = vst [vmem:[#allocation10] sm:$0xff] %v1379
    %1386 = vst [vmem:[#allocation10 + $0x8] sm:$0xff] %v1382
    // Predicated region
    $region46: #{tpu_custom_call.1} parent=1 // pred_check
      _
    $region47: #{tpu_custom_call.1} parent=1 // pred_check_branch
      %1388 = sbr.rel (0) target = $region49
    $region48: #{tpu_custom_call.1} parent=1 // pred_region
      %s1390 = ssub.s32 256, 256
      %1391 = vsyncadd [#allocation4], %s1390
      %s1392 = sshll.u32 [#allocation10], 4
      %s1393 = int_to_ptr.vmem [resolvable:$true] %s1392
      %1398 = dma.vmem_to_hbm [thread:$0]  %s1393, 256, %s7, [#allocation4], 128, 128, 8
    $region49: #{tpu_custom_call.1} parent=1 // pred_fallthru
      _
    // Predicated region
    $region50: #{tpu_custom_call.1} parent=1 // pred_check
      _
    $region51: #{tpu_custom_call.1} parent=1 // pred_check_branch
      %1400 = sbr.rel (0) target = $region53
    $region52: #{tpu_custom_call.1} parent=1 // pred_region
      %1401 = dma.done [#allocation4], 256
    $region53: #{tpu_custom_call.1} parent=1 // pred_fallthru
      _
    %1402 = vsyncpa [#allocation3], 1
    %1403 = vsyncpa [#allocation6], 1
    %1404 = vsyncpa [#allocation9], 1
    %1405 = vsyncpa [#allocation4], 1

</llo_original>
